<compile_context>
chip_gen: v6e
topology: v6e:2x2x1
jax: 0.10.0
libtpu: 0.0.40
codegen_flags: <defaults>
</compile_context>

<pallas_src>
import functools

import jax
import jax.numpy as jnp
from jax.experimental import pallas as pl
from jax.experimental.pallas import tpu as pltpu


def _pick_batch_tile(batch):
    """Batch tile: fill sublanes, keep blocks (8,*)-aligned or full-extent."""
    if batch <= 8:
        return batch
    if batch % 8 == 0:
        return 8
    return batch  # fall back to whole batch in one block (always legal)


def lstm_kernel(x_ref, wih_t_ref, whh_t_ref, b_ref, o_ref,
                xg_ref, hist_ref, h_ref, c_ref, *, seq_len, hidden, unroll):
    # Per grid step (one batch tile):
    #   x_ref     (L, BT, C)   time-major input slab
    #   wih_t_ref (C, 4H)      weight_ih^T, gate columns in (i,f,o,g) order
    #   whh_t_ref (H, 4H)      weight_hh^T, same column order
    #   b_ref     (1, 4H)      b_ih + b_hh (folded), same column order
    #   o_ref     (L, BT, H)   hidden states for every timestep (time-major)
    #   xg_ref    (L, BT, 4H)  f32 scratch: hoisted input gates
    #   hist_ref  (L, BT, H)   f32 scratch: hidden-state history
    #   h_ref/c_ref (BT, H)    f32 scratch: recurrent state
    H = hidden
    GH = 4 * H
    H3 = 3 * H

    x = x_ref[...].astype(jnp.float32)            # (L, BT, C)
    wih_t = wih_t_ref[...].astype(jnp.float32)    # (C, 4H)
    whh_t = whh_t_ref[...].astype(jnp.float32)    # (H, 4H)
    bias = b_ref[...].astype(jnp.float32)         # (1, 4H)

    L, BT, C = x.shape

    # ---- Hoisted input projection (time-major), biases folded in ----------
    if C <= 8:
        # VPU broadcast-FMAs: MXU would be <0.1% utilized at these shapes.
        acc = x[:, :, 0:1] * wih_t[0:1, :].reshape(1, 1, GH)
        for c in range(1, C):
            acc = acc + x[:, :, c:c + 1] * wih_t[c:c + 1, :].reshape(1, 1, GH)
    else:
        x2 = x.reshape(L * BT, C)
        acc = jnp.dot(x2, wih_t,
                      preferred_element_type=jnp.float32).reshape(L, BT, GH)
    xg_ref[...] = acc + bias.reshape(1, 1, GH)

    # ---- Recurrent projection helper (loop invariants hoisted once) -------
    if H <= 8:
        whh_rows = [whh_t[k:k + 1, :] for k in range(H)]   # sliced ONCE
        def hh_proj(h):
            out = h[:, 0:1] * whh_rows[0]
            for k in range(1, H):
                out = out + h[:, k:k + 1] * whh_rows[k]
            return out
    else:
        def hh_proj(h):
            return jnp.dot(h, whh_t, preferred_element_type=jnp.float32)

    h_ref[...] = jnp.zeros_like(h_ref)
    c_ref[...] = jnp.zeros_like(c_ref)

    def step(t, carry):
        # gates_t = (x_t W_ih^T + b) + h_{t-1} W_hh^T      -> (BT, 4H)
        gates = xg_ref[t] + hh_proj(h_ref[...])
        sig = jax.nn.sigmoid(gates[:, 0:H3])      # i | f | o in one EUP pass
        g_g = jnp.tanh(gates[:, H3:GH])
        i_g = sig[:, 0:H]
        f_g = sig[:, H:2 * H]
        o_g = sig[:, 2 * H:H3]
        c_new = f_g * c_ref[...] + i_g * g_g
        h_new = o_g * jnp.tanh(c_new)
        c_ref[...] = c_new
        h_ref[...] = h_new
        hist_ref[t] = h_new                       # f32 history, no HBM traffic
        return carry

    jax.lax.fori_loop(0, seq_len, step, 0, unroll=unroll)

    # Single cast + full-block writeback (no per-timestep masked stores).
    o_ref[...] = hist_ref[...].astype(o_ref.dtype)


def lstm(x, w_ih, w_hh, b_ih, b_hh):
    """x: (B, C, L) -> (B, C, L); mirrors the torch module's forward."""
    bsz, chans, seq = x.shape
    hid = w_hh.shape[1]
    gdim = 4 * hid

    # Reorder gate rows from PyTorch (i,f,g,o) to (i,f,o,g) so the kernel can
    # run one sigmoid over the first 3H columns and one tanh over the last H.
    perm = jnp.concatenate([
        jnp.arange(0, hid),
        jnp.arange(hid, 2 * hid),
        jnp.arange(3 * hid, 4 * hid),
        jnp.arange(2 * hid, 3 * hid),
    ])
    wih_t = jnp.transpose(w_ih[perm, :])              # (C, 4H)
    whh_t = jnp.transpose(w_hh[perm, :])              # (H, 4H)
    bias = (b_ih + b_hh)[perm].reshape(1, gdim)       # fold both biases

    x_tm = jnp.transpose(x, (2, 0, 1))                # (L, B, C) time-major

    bt = _pick_batch_tile(bsz)
    unroll = True if seq <= 32 else 8
    kernel = functools.partial(lstm_kernel, seq_len=seq, hidden=hid,
                               unroll=unroll)

    out_tm = pl.pallas_call(
        kernel,
        out_shape=jax.ShapeDtypeStruct((seq, bsz, hid), x.dtype),
        grid=(bsz // bt,),
        in_specs=[
            pl.BlockSpec((seq, bt, chans), lambda b: (0, b, 0)),  # x tile
            pl.BlockSpec((chans, gdim), lambda b: (0, 0)),        # W_ih^T
            pl.BlockSpec((hid, gdim), lambda b: (0, 0)),          # W_hh^T
            pl.BlockSpec((1, gdim), lambda b: (0, 0)),            # bias
        ],
        out_specs=pl.BlockSpec((seq, bt, hid), lambda b: (0, b, 0)),
        scratch_shapes=[
            pltpu.VMEM((seq, bt, gdim), jnp.float32),   # hoisted input gates
            pltpu.VMEM((seq, bt, hid), jnp.float32),    # hidden-state history
            pltpu.VMEM((bt, hid), jnp.float32),         # h state
            pltpu.VMEM((bt, hid), jnp.float32),         # c state
        ],
        compiler_params=pltpu.CompilerParams(
            dimension_semantics=("parallel",)),         # batch tiles independent
    )(x_tm, wih_t, whh_t, bias)

    return jnp.transpose(out_tm, (1, 2, 0))             # (B, H, L)


def lstm_ref(x, w_ih, w_hh, b_ih, b_hh):
    """Pure-JAX reference (lax.scan) mirroring nn.LSTM + the module permutes."""
    bsz, _, _ = x.shape
    hid = w_hh.shape[1]
    xs = jnp.transpose(x, (2, 0, 1)).astype(jnp.float32)      # (L, B, C)
    wih_t = w_ih.T.astype(jnp.float32)
    whh_t = w_hh.T.astype(jnp.float32)
    bias = (b_ih + b_hh)[None, :].astype(jnp.float32)

    def step(carry, x_t):
        h, c_state = carry
        gates = x_t @ wih_t + h @ whh_t + bias
        i_g = jax.nn.sigmoid(gates[:, 0:hid])
        f_g = jax.nn.sigmoid(gates[:, hid:2 * hid])
        g_g = jnp.tanh(gates[:, 2 * hid:3 * hid])
        o_g = jax.nn.sigmoid(gates[:, 3 * hid:4 * hid])
        c_state = f_g * c_state + i_g * g_g
        h = o_g * jnp.tanh(c_state)
        return (h, c_state), h

    init = (jnp.zeros((bsz, hid), jnp.float32),
            jnp.zeros((bsz, hid), jnp.float32))
    _, hs = jax.lax.scan(step, init, xs)                       # (L, B, H)
    return jnp.transpose(hs, (1, 2, 0)).astype(x.dtype)        # (B, H, L)


if __name__ == "__main__":
    # (batch, channels, seq_len) input, as the torch Operation expects.
    B, C, L = 2, 4, 16
    H = C  # nn.LSTM(channels, channels)

    key = jax.random.PRNGKey(0)
    kx, k1, k2, k3, k4 = jax.random.split(key, 5)
    x = jax.random.normal(kx, (B, C, L), dtype=jnp.float32)
    # Synthetic parameters with nn.LSTM shapes: weight_ih (4H, C), weight_hh (4H, H).
    w_ih = jax.random.normal(k1, (4 * H, C), dtype=jnp.float32) * 0.3
    w_hh = jax.random.normal(k2, (4 * H, H), dtype=jnp.float32) * 0.3
    b_ih = jax.random.normal(k3, (4 * H,), dtype=jnp.float32) * 0.1
    b_hh = jax.random.normal(k4, (4 * H,), dtype=jnp.float32) * 0.1

    out = jax.block_until_ready(lstm(x, w_ih, w_hh, b_ih, b_hh))
    ref = lstm_ref(x, w_ih, w_hh, b_ih, b_hh)

    assert out.shape == ref.shape == (B, C, L), (out.shape, ref.shape)
    assert jnp.allclose(out, ref, atol=1e-3, rtol=1e-3), \
        float(jnp.max(jnp.abs(out - ref)))

    print("KERNEL_OK")
</pallas_src>

<mosaic_0001>
module attributes {stable_mosaic.version = 11 : i64} {
  func.func @lstm_kernel(%arg0: i32, %arg1: memref<16x2x4xf32, #tpu.memory_space<vmem>>, %arg2: memref<4x16xf32, #tpu.memory_space<vmem>>, %arg3: memref<4x16xf32, #tpu.memory_space<vmem>>, %arg4: memref<1x16xf32, #tpu.memory_space<vmem>>, %arg5: memref<16x2x4xf32, #tpu.memory_space<vmem>>, %arg6: memref<16x2x16xf32, #tpu.memory_space<vmem>>, %arg7: memref<16x2x4xf32, #tpu.memory_space<vmem>>, %arg8: memref<2x4xf32, #tpu.memory_space<vmem>>, %arg9: memref<2x4xf32, #tpu.memory_space<vmem>>) attributes {dimension_semantics = [#tpu.dimension_semantics<parallel>], iteration_bounds = array<i64: 1>, scalar_prefetch = 0 : i64, scratch_operands = 4 : i64, tpu.core_type = #tpu.core_type<tc>, window_params = [{transform_indices = @transform_0, window_bounds = array<i64: 16, 2, 4>}, {pipeline_mode = #tpu.pipeline_mode<synchronous>, transform_indices = @transform_1, window_bounds = array<i64: 4, 16>}, {pipeline_mode = #tpu.pipeline_mode<synchronous>, transform_indices = @transform_2, window_bounds = array<i64: 4, 16>}, {pipeline_mode = #tpu.pipeline_mode<synchronous>, transform_indices = @transform_3, window_bounds = array<i64: 1, 16>}, {transform_indices = @transform_4, window_bounds = array<i64: 16, 2, 4>}]} {
    %c0 = arith.constant 0 : index
    %c0_0 = arith.constant 0 : index
    %c0_1 = arith.constant 0 : index
    %0 = vector.load %arg1[%c0, %c0_0, %c0_1] : memref<16x2x4xf32, #tpu.memory_space<vmem>>, vector<16x2x4xf32>
    %c0_2 = arith.constant 0 : index
    %c0_3 = arith.constant 0 : index
    %1 = vector.load %arg2[%c0_2, %c0_3] : memref<4x16xf32, #tpu.memory_space<vmem>>, vector<4x16xf32>
    %c0_4 = arith.constant 0 : index
    %c0_5 = arith.constant 0 : index
    %2 = vector.load %arg3[%c0_4, %c0_5] : memref<4x16xf32, #tpu.memory_space<vmem>>, vector<4x16xf32>
    %c0_6 = arith.constant 0 : index
    %c0_7 = arith.constant 0 : index
    %3 = vector.load %arg4[%c0_6, %c0_7] : memref<1x16xf32, #tpu.memory_space<vmem>>, vector<1x16xf32>
    %4 = vector.extract_strided_slice %0 {offsets = [0, 0, 0], sizes = [16, 2, 1], strides = [1, 1, 1]} : vector<16x2x4xf32> to vector<16x2x1xf32>
    %5 = vector.extract_strided_slice %1 {offsets = [0, 0], sizes = [1, 16], strides = [1, 1]} : vector<4x16xf32> to vector<1x16xf32>
    %6 = vector.shape_cast %5 : vector<1x16xf32> to vector<1x1x16xf32>
    %7 = vector.broadcast %4 : vector<16x2x1xf32> to vector<16x2x16xf32>
    %8 = vector.broadcast %6 : vector<1x1x16xf32> to vector<16x2x16xf32>
    %9 = arith.mulf %7, %8 : vector<16x2x16xf32>
    %10 = vector.extract_strided_slice %0 {offsets = [0, 0, 1], sizes = [16, 2, 1], strides = [1, 1, 1]} : vector<16x2x4xf32> to vector<16x2x1xf32>
    %11 = vector.extract_strided_slice %1 {offsets = [1, 0], sizes = [1, 16], strides = [1, 1]} : vector<4x16xf32> to vector<1x16xf32>
    %12 = vector.shape_cast %11 : vector<1x16xf32> to vector<1x1x16xf32>
    %13 = vector.broadcast %10 : vector<16x2x1xf32> to vector<16x2x16xf32>
    %14 = vector.broadcast %12 : vector<1x1x16xf32> to vector<16x2x16xf32>
    %15 = arith.mulf %13, %14 : vector<16x2x16xf32>
    %16 = arith.addf %9, %15 : vector<16x2x16xf32>
    %17 = vector.extract_strided_slice %0 {offsets = [0, 0, 2], sizes = [16, 2, 1], strides = [1, 1, 1]} : vector<16x2x4xf32> to vector<16x2x1xf32>
    %18 = vector.extract_strided_slice %1 {offsets = [2, 0], sizes = [1, 16], strides = [1, 1]} : vector<4x16xf32> to vector<1x16xf32>
    %19 = vector.shape_cast %18 : vector<1x16xf32> to vector<1x1x16xf32>
    %20 = vector.broadcast %17 : vector<16x2x1xf32> to vector<16x2x16xf32>
    %21 = vector.broadcast %19 : vector<1x1x16xf32> to vector<16x2x16xf32>
    %22 = arith.mulf %20, %21 : vector<16x2x16xf32>
    %23 = arith.addf %16, %22 : vector<16x2x16xf32>
    %24 = vector.extract_strided_slice %0 {offsets = [0, 0, 3], sizes = [16, 2, 1], strides = [1, 1, 1]} : vector<16x2x4xf32> to vector<16x2x1xf32>
    %25 = vector.extract_strided_slice %1 {offsets = [3, 0], sizes = [1, 16], strides = [1, 1]} : vector<4x16xf32> to vector<1x16xf32>
    %26 = vector.shape_cast %25 : vector<1x16xf32> to vector<1x1x16xf32>
    %27 = vector.broadcast %24 : vector<16x2x1xf32> to vector<16x2x16xf32>
    %28 = vector.broadcast %26 : vector<1x1x16xf32> to vector<16x2x16xf32>
    %29 = arith.mulf %27, %28 : vector<16x2x16xf32>
    %30 = arith.addf %23, %29 : vector<16x2x16xf32>
    %31 = vector.shape_cast %3 : vector<1x16xf32> to vector<1x1x16xf32>
    %32 = vector.broadcast %31 : vector<1x1x16xf32> to vector<16x2x16xf32>
    %33 = arith.addf %30, %32 : vector<16x2x16xf32>
    %c0_8 = arith.constant 0 : index
    %c0_9 = arith.constant 0 : index
    %c0_10 = arith.constant 0 : index
    %34 = vector.load %arg6[%c0_8, %c0_9, %c0_10] : memref<16x2x16xf32, #tpu.memory_space<vmem>>, vector<16x2x16xf32>
    tpu.vector_store %arg6[%c0_8, %c0_9, %c0_10], %33 {strides = array<i32>} : memref<16x2x16xf32, #tpu.memory_space<vmem>>, vector<16x2x16xf32>,
    %35 = vector.extract_strided_slice %2 {offsets = [0, 0], sizes = [1, 16], strides = [1, 1]} : vector<4x16xf32> to vector<1x16xf32>
    %36 = vector.extract_strided_slice %2 {offsets = [1, 0], sizes = [1, 16], strides = [1, 1]} : vector<4x16xf32> to vector<1x16xf32>
    %37 = vector.extract_strided_slice %2 {offsets = [2, 0], sizes = [1, 16], strides = [1, 1]} : vector<4x16xf32> to vector<1x16xf32>
    %38 = vector.extract_strided_slice %2 {offsets = [3, 0], sizes = [1, 16], strides = [1, 1]} : vector<4x16xf32> to vector<1x16xf32>
    %cst = arith.constant 0.000000e+00 : f32
    %39 = vector.broadcast %cst : f32 to vector<2x4xf32>
    %c0_11 = arith.constant 0 : index
    %c0_12 = arith.constant 0 : index
    %40 = vector.load %arg8[%c0_11, %c0_12] : memref<2x4xf32, #tpu.memory_space<vmem>>, vector<2x4xf32>
    tpu.vector_store %arg8[%c0_11, %c0_12], %39 {strides = array<i32>} : memref<2x4xf32, #tpu.memory_space<vmem>>, vector<2x4xf32>,
    %cst_13 = arith.constant 0.000000e+00 : f32
    %41 = vector.broadcast %cst_13 : f32 to vector<2x4xf32>
    %c0_14 = arith.constant 0 : index
    %c0_15 = arith.constant 0 : index
    %42 = vector.load %arg9[%c0_14, %c0_15] : memref<2x4xf32, #tpu.memory_space<vmem>>, vector<2x4xf32>
    tpu.vector_store %arg9[%c0_14, %c0_15], %41 {strides = array<i32>} : memref<2x4xf32, #tpu.memory_space<vmem>>, vector<2x4xf32>,
    %c0_i32 = arith.constant 0 : i32
    %43 = arith.index_cast %c0_i32 : i32 to index
    %c0_16 = arith.constant 0 : index
    %c0_17 = arith.constant 0 : index
    %44 = vector.load %arg6[%43, %c0_16, %c0_17] : memref<16x2x16xf32, #tpu.memory_space<vmem>>, vector<1x2x16xf32>
    %45 = vector.shape_cast %44 : vector<1x2x16xf32> to vector<2x16xf32>
    %c0_18 = arith.constant 0 : index
    %c0_19 = arith.constant 0 : index
    %46 = vector.load %arg8[%c0_18, %c0_19] : memref<2x4xf32, #tpu.memory_space<vmem>>, vector<2x4xf32>
    %47 = vector.extract_strided_slice %46 {offsets = [0, 0], sizes = [2, 1], strides = [1, 1]} : vector<2x4xf32> to vector<2x1xf32>
    %48 = vector.broadcast %47 : vector<2x1xf32> to vector<2x16xf32>
    %49 = vector.broadcast %35 : vector<1x16xf32> to vector<2x16xf32>
    %50 = arith.mulf %48, %49 : vector<2x16xf32>
    %51 = vector.extract_strided_slice %46 {offsets = [0, 1], sizes = [2, 1], strides = [1, 1]} : vector<2x4xf32> to vector<2x1xf32>
    %52 = vector.broadcast %51 : vector<2x1xf32> to vector<2x16xf32>
    %53 = vector.broadcast %36 : vector<1x16xf32> to vector<2x16xf32>
    %54 = arith.mulf %52, %53 : vector<2x16xf32>
    %55 = arith.addf %50, %54 : vector<2x16xf32>
    %56 = vector.extract_strided_slice %46 {offsets = [0, 2], sizes = [2, 1], strides = [1, 1]} : vector<2x4xf32> to vector<2x1xf32>
    %57 = vector.broadcast %56 : vector<2x1xf32> to vector<2x16xf32>
    %58 = vector.broadcast %37 : vector<1x16xf32> to vector<2x16xf32>
    %59 = arith.mulf %57, %58 : vector<2x16xf32>
    %60 = arith.addf %55, %59 : vector<2x16xf32>
    %61 = vector.extract_strided_slice %46 {offsets = [0, 3], sizes = [2, 1], strides = [1, 1]} : vector<2x4xf32> to vector<2x1xf32>
    %62 = vector.broadcast %61 : vector<2x1xf32> to vector<2x16xf32>
    %63 = vector.broadcast %38 : vector<1x16xf32> to vector<2x16xf32>
    %64 = arith.mulf %62, %63 : vector<2x16xf32>
    %65 = arith.addf %60, %64 : vector<2x16xf32>
    %66 = arith.addf %45, %65 : vector<2x16xf32>
    %67 = vector.extract_strided_slice %66 {offsets = [0, 0], sizes = [2, 12], strides = [1, 1]} : vector<2x16xf32> to vector<2x12xf32>
    %68 = arith.negf %67 : vector<2x12xf32>
    %69 = math.exp %68 : vector<2x12xf32>
    %cst_20 = arith.constant 1.000000e+00 : f32
    %70 = vector.broadcast %cst_20 : f32 to vector<2x12xf32>
    %71 = arith.addf %70, %69 : vector<2x12xf32>
    %72 = arith.divf %70, %71 : vector<2x12xf32>
    %73 = vector.extract_strided_slice %66 {offsets = [0, 12], sizes = [2, 4], strides = [1, 1]} : vector<2x16xf32> to vector<2x4xf32>
    %74 = math.tanh %73 : vector<2x4xf32>
    %75 = vector.extract_strided_slice %72 {offsets = [0, 0], sizes = [2, 4], strides = [1, 1]} : vector<2x12xf32> to vector<2x4xf32>
    %76 = vector.extract_strided_slice %72 {offsets = [0, 4], sizes = [2, 4], strides = [1, 1]} : vector<2x12xf32> to vector<2x4xf32>
    %77 = vector.extract_strided_slice %72 {offsets = [0, 8], sizes = [2, 4], strides = [1, 1]} : vector<2x12xf32> to vector<2x4xf32>
    %c0_21 = arith.constant 0 : index
    %c0_22 = arith.constant 0 : index
    %78 = vector.load %arg9[%c0_21, %c0_22] : memref<2x4xf32, #tpu.memory_space<vmem>>, vector<2x4xf32>
    %79 = arith.mulf %76, %78 : vector<2x4xf32>
    %80 = arith.mulf %75, %74 : vector<2x4xf32>
    %81 = arith.addf %79, %80 : vector<2x4xf32>
    %82 = math.tanh %81 : vector<2x4xf32>
    %83 = arith.mulf %77, %82 : vector<2x4xf32>
    %c0_23 = arith.constant 0 : index
    %c0_24 = arith.constant 0 : index
    %84 = vector.load %arg9[%c0_23, %c0_24] : memref<2x4xf32, #tpu.memory_space<vmem>>, vector<2x4xf32>
    tpu.vector_store %arg9[%c0_23, %c0_24], %81 {strides = array<i32>} : memref<2x4xf32, #tpu.memory_space<vmem>>, vector<2x4xf32>,
    %c0_25 = arith.constant 0 : index
    %c0_26 = arith.constant 0 : index
    %85 = vector.load %arg8[%c0_25, %c0_26] : memref<2x4xf32, #tpu.memory_space<vmem>>, vector<2x4xf32>
    tpu.vector_store %arg8[%c0_25, %c0_26], %83 {strides = array<i32>} : memref<2x4xf32, #tpu.memory_space<vmem>>, vector<2x4xf32>,
    %86 = arith.index_cast %c0_i32 : i32 to index
    %c0_27 = arith.constant 0 : index
    %c0_28 = arith.constant 0 : index
    %87 = vector.load %arg7[%86, %c0_27, %c0_28] : memref<16x2x4xf32, #tpu.memory_space<vmem>>, vector<1x2x4xf32>
    %88 = vector.shape_cast %87 : vector<1x2x4xf32> to vector<2x4xf32>
    %89 = vector.shape_cast %83 : vector<2x4xf32> to vector<1x2x4xf32>
    tpu.vector_store %arg7[%86, %c0_27, %c0_28], %89 {strides = array<i32>} : memref<16x2x4xf32, #tpu.memory_space<vmem>>, vector<1x2x4xf32>,
    %c1_i32 = arith.constant 1 : i32
    %90 = arith.index_cast %c1_i32 : i32 to index
    %c0_29 = arith.constant 0 : index
    %c0_30 = arith.constant 0 : index
    %91 = vector.load %arg6[%90, %c0_29, %c0_30] : memref<16x2x16xf32, #tpu.memory_space<vmem>>, vector<1x2x16xf32>
    %92 = vector.shape_cast %91 : vector<1x2x16xf32> to vector<2x16xf32>
    %c0_31 = arith.constant 0 : index
    %c0_32 = arith.constant 0 : index
    %93 = vector.load %arg8[%c0_31, %c0_32] : memref<2x4xf32, #tpu.memory_space<vmem>>, vector<2x4xf32>
    %94 = vector.extract_strided_slice %93 {offsets = [0, 0], sizes = [2, 1], strides = [1, 1]} : vector<2x4xf32> to vector<2x1xf32>
    %95 = vector.broadcast %94 : vector<2x1xf32> to vector<2x16xf32>
    %96 = vector.broadcast %35 : vector<1x16xf32> to vector<2x16xf32>
    %97 = arith.mulf %95, %96 : vector<2x16xf32>
    %98 = vector.extract_strided_slice %93 {offsets = [0, 1], sizes = [2, 1], strides = [1, 1]} : vector<2x4xf32> to vector<2x1xf32>
    %99 = vector.broadcast %98 : vector<2x1xf32> to vector<2x16xf32>
    %100 = vector.broadcast %36 : vector<1x16xf32> to vector<2x16xf32>
    %101 = arith.mulf %99, %100 : vector<2x16xf32>
    %102 = arith.addf %97, %101 : vector<2x16xf32>
    %103 = vector.extract_strided_slice %93 {offsets = [0, 2], sizes = [2, 1], strides = [1, 1]} : vector<2x4xf32> to vector<2x1xf32>
    %104 = vector.broadcast %103 : vector<2x1xf32> to vector<2x16xf32>
    %105 = vector.broadcast %37 : vector<1x16xf32> to vector<2x16xf32>
    %106 = arith.mulf %104, %105 : vector<2x16xf32>
    %107 = arith.addf %102, %106 : vector<2x16xf32>
    %108 = vector.extract_strided_slice %93 {offsets = [0, 3], sizes = [2, 1], strides = [1, 1]} : vector<2x4xf32> to vector<2x1xf32>
    %109 = vector.broadcast %108 : vector<2x1xf32> to vector<2x16xf32>
    %110 = vector.broadcast %38 : vector<1x16xf32> to vector<2x16xf32>
    %111 = arith.mulf %109, %110 : vector<2x16xf32>
    %112 = arith.addf %107, %111 : vector<2x16xf32>
    %113 = arith.addf %92, %112 : vector<2x16xf32>
    %114 = vector.extract_strided_slice %113 {offsets = [0, 0], sizes = [2, 12], strides = [1, 1]} : vector<2x16xf32> to vector<2x12xf32>
    %115 = arith.negf %114 : vector<2x12xf32>
    %116 = math.exp %115 : vector<2x12xf32>
    %cst_33 = arith.constant 1.000000e+00 : f32
    %117 = vector.broadcast %cst_33 : f32 to vector<2x12xf32>
    %118 = arith.addf %117, %116 : vector<2x12xf32>
    %119 = arith.divf %117, %118 : vector<2x12xf32>
    %120 = vector.extract_strided_slice %113 {offsets = [0, 12], sizes = [2, 4], strides = [1, 1]} : vector<2x16xf32> to vector<2x4xf32>
    %121 = math.tanh %120 : vector<2x4xf32>
    %122 = vector.extract_strided_slice %119 {offsets = [0, 0], sizes = [2, 4], strides = [1, 1]} : vector<2x12xf32> to vector<2x4xf32>
    %123 = vector.extract_strided_slice %119 {offsets = [0, 4], sizes = [2, 4], strides = [1, 1]} : vector<2x12xf32> to vector<2x4xf32>
    %124 = vector.extract_strided_slice %119 {offsets = [0, 8], sizes = [2, 4], strides = [1, 1]} : vector<2x12xf32> to vector<2x4xf32>
    %c0_34 = arith.constant 0 : index
    %c0_35 = arith.constant 0 : index
    %125 = vector.load %arg9[%c0_34, %c0_35] : memref<2x4xf32, #tpu.memory_space<vmem>>, vector<2x4xf32>
    %126 = arith.mulf %123, %125 : vector<2x4xf32>
    %127 = arith.mulf %122, %121 : vector<2x4xf32>
    %128 = arith.addf %126, %127 : vector<2x4xf32>
    %129 = math.tanh %128 : vector<2x4xf32>
    %130 = arith.mulf %124, %129 : vector<2x4xf32>
    %c0_36 = arith.constant 0 : index
    %c0_37 = arith.constant 0 : index
    %131 = vector.load %arg9[%c0_36, %c0_37] : memref<2x4xf32, #tpu.memory_space<vmem>>, vector<2x4xf32>
    tpu.vector_store %arg9[%c0_36, %c0_37], %128 {strides = array<i32>} : memref<2x4xf32, #tpu.memory_space<vmem>>, vector<2x4xf32>,
    %c0_38 = arith.constant 0 : index
    %c0_39 = arith.constant 0 : index
    %132 = vector.load %arg8[%c0_38, %c0_39] : memref<2x4xf32, #tpu.memory_space<vmem>>, vector<2x4xf32>
    tpu.vector_store %arg8[%c0_38, %c0_39], %130 {strides = array<i32>} : memref<2x4xf32, #tpu.memory_space<vmem>>, vector<2x4xf32>,
    %133 = arith.index_cast %c1_i32 : i32 to index
    %c0_40 = arith.constant 0 : index
    %c0_41 = arith.constant 0 : index
    %134 = vector.load %arg7[%133, %c0_40, %c0_41] : memref<16x2x4xf32, #tpu.memory_space<vmem>>, vector<1x2x4xf32>
    %135 = vector.shape_cast %134 : vector<1x2x4xf32> to vector<2x4xf32>
    %136 = vector.shape_cast %130 : vector<2x4xf32> to vector<1x2x4xf32>
    tpu.vector_store %arg7[%133, %c0_40, %c0_41], %136 {strides = array<i32>} : memref<16x2x4xf32, #tpu.memory_space<vmem>>, vector<1x2x4xf32>,
    %c2_i32 = arith.constant 2 : i32
    %137 = arith.index_cast %c2_i32 : i32 to index
    %c0_42 = arith.constant 0 : index
    %c0_43 = arith.constant 0 : index
    %138 = vector.load %arg6[%137, %c0_42, %c0_43] : memref<16x2x16xf32, #tpu.memory_space<vmem>>, vector<1x2x16xf32>
    %139 = vector.shape_cast %138 : vector<1x2x16xf32> to vector<2x16xf32>
    %c0_44 = arith.constant 0 : index
    %c0_45 = arith.constant 0 : index
    %140 = vector.load %arg8[%c0_44, %c0_45] : memref<2x4xf32, #tpu.memory_space<vmem>>, vector<2x4xf32>
    %141 = vector.extract_strided_slice %140 {offsets = [0, 0], sizes = [2, 1], strides = [1, 1]} : vector<2x4xf32> to vector<2x1xf32>
    %142 = vector.broadcast %141 : vector<2x1xf32> to vector<2x16xf32>
    %143 = vector.broadcast %35 : vector<1x16xf32> to vector<2x16xf32>
    %144 = arith.mulf %142, %143 : vector<2x16xf32>
    %145 = vector.extract_strided_slice %140 {offsets = [0, 1], sizes = [2, 1], strides = [1, 1]} : vector<2x4xf32> to vector<2x1xf32>
    %146 = vector.broadcast %145 : vector<2x1xf32> to vector<2x16xf32>
    %147 = vector.broadcast %36 : vector<1x16xf32> to vector<2x16xf32>
    %148 = arith.mulf %146, %147 : vector<2x16xf32>
    %149 = arith.addf %144, %148 : vector<2x16xf32>
    %150 = vector.extract_strided_slice %140 {offsets = [0, 2], sizes = [2, 1], strides = [1, 1]} : vector<2x4xf32> to vector<2x1xf32>
    %151 = vector.broadcast %150 : vector<2x1xf32> to vector<2x16xf32>
    %152 = vector.broadcast %37 : vector<1x16xf32> to vector<2x16xf32>
    %153 = arith.mulf %151, %152 : vector<2x16xf32>
    %154 = arith.addf %149, %153 : vector<2x16xf32>
    %155 = vector.extract_strided_slice %140 {offsets = [0, 3], sizes = [2, 1], strides = [1, 1]} : vector<2x4xf32> to vector<2x1xf32>
    %156 = vector.broadcast %155 : vector<2x1xf32> to vector<2x16xf32>
    %157 = vector.broadcast %38 : vector<1x16xf32> to vector<2x16xf32>
    %158 = arith.mulf %156, %157 : vector<2x16xf32>
    %159 = arith.addf %154, %158 : vector<2x16xf32>
    %160 = arith.addf %139, %159 : vector<2x16xf32>
    %161 = vector.extract_strided_slice %160 {offsets = [0, 0], sizes = [2, 12], strides = [1, 1]} : vector<2x16xf32> to vector<2x12xf32>
    %162 = arith.negf %161 : vector<2x12xf32>
    %163 = math.exp %162 : vector<2x12xf32>
    %cst_46 = arith.constant 1.000000e+00 : f32
    %164 = vector.broadcast %cst_46 : f32 to vector<2x12xf32>
    %165 = arith.addf %164, %163 : vector<2x12xf32>
    %166 = arith.divf %164, %165 : vector<2x12xf32>
    %167 = vector.extract_strided_slice %160 {offsets = [0, 12], sizes = [2, 4], strides = [1, 1]} : vector<2x16xf32> to vector<2x4xf32>
    %168 = math.tanh %167 : vector<2x4xf32>
    %169 = vector.extract_strided_slice %166 {offsets = [0, 0], sizes = [2, 4], strides = [1, 1]} : vector<2x12xf32> to vector<2x4xf32>
    %170 = vector.extract_strided_slice %166 {offsets = [0, 4], sizes = [2, 4], strides = [1, 1]} : vector<2x12xf32> to vector<2x4xf32>
    %171 = vector.extract_strided_slice %166 {offsets = [0, 8], sizes = [2, 4], strides = [1, 1]} : vector<2x12xf32> to vector<2x4xf32>
    %c0_47 = arith.constant 0 : index
    %c0_48 = arith.constant 0 : index
    %172 = vector.load %arg9[%c0_47, %c0_48] : memref<2x4xf32, #tpu.memory_space<vmem>>, vector<2x4xf32>
    %173 = arith.mulf %170, %172 : vector<2x4xf32>
    %174 = arith.mulf %169, %168 : vector<2x4xf32>
    %175 = arith.addf %173, %174 : vector<2x4xf32>
    %176 = math.tanh %175 : vector<2x4xf32>
    %177 = arith.mulf %171, %176 : vector<2x4xf32>
    %c0_49 = arith.constant 0 : index
    %c0_50 = arith.constant 0 : index
    %178 = vector.load %arg9[%c0_49, %c0_50] : memref<2x4xf32, #tpu.memory_space<vmem>>, vector<2x4xf32>
    tpu.vector_store %arg9[%c0_49, %c0_50], %175 {strides = array<i32>} : memref<2x4xf32, #tpu.memory_space<vmem>>, vector<2x4xf32>,
    %c0_51 = arith.constant 0 : index
    %c0_52 = arith.constant 0 : index
    %179 = vector.load %arg8[%c0_51, %c0_52] : memref<2x4xf32, #tpu.memory_space<vmem>>, vector<2x4xf32>
    tpu.vector_store %arg8[%c0_51, %c0_52], %177 {strides = array<i32>} : memref<2x4xf32, #tpu.memory_space<vmem>>, vector<2x4xf32>,
    %180 = arith.index_cast %c2_i32 : i32 to index
    %c0_53 = arith.constant 0 : index
    %c0_54 = arith.constant 0 : index
    %181 = vector.load %arg7[%180, %c0_53, %c0_54] : memref<16x2x4xf32, #tpu.memory_space<vmem>>, vector<1x2x4xf32>
    %182 = vector.shape_cast %181 : vector<1x2x4xf32> to vector<2x4xf32>
    %183 = vector.shape_cast %177 : vector<2x4xf32> to vector<1x2x4xf32>
    tpu.vector_store %arg7[%180, %c0_53, %c0_54], %183 {strides = array<i32>} : memref<16x2x4xf32, #tpu.memory_space<vmem>>, vector<1x2x4xf32>,
    %c3_i32 = arith.constant 3 : i32
    %184 = arith.index_cast %c3_i32 : i32 to index
    %c0_55 = arith.constant 0 : index
    %c0_56 = arith.constant 0 : index
    %185 = vector.load %arg6[%184, %c0_55, %c0_56] : memref<16x2x16xf32, #tpu.memory_space<vmem>>, vector<1x2x16xf32>
    %186 = vector.shape_cast %185 : vector<1x2x16xf32> to vector<2x16xf32>
    %c0_57 = arith.constant 0 : index
    %c0_58 = arith.constant 0 : index
    %187 = vector.load %arg8[%c0_57, %c0_58] : memref<2x4xf32, #tpu.memory_space<vmem>>, vector<2x4xf32>
    %188 = vector.extract_strided_slice %187 {offsets = [0, 0], sizes = [2, 1], strides = [1, 1]} : vector<2x4xf32> to vector<2x1xf32>
    %189 = vector.broadcast %188 : vector<2x1xf32> to vector<2x16xf32>
    %190 = vector.broadcast %35 : vector<1x16xf32> to vector<2x16xf32>
    %191 = arith.mulf %189, %190 : vector<2x16xf32>
    %192 = vector.extract_strided_slice %187 {offsets = [0, 1], sizes = [2, 1], strides = [1, 1]} : vector<2x4xf32> to vector<2x1xf32>
    %193 = vector.broadcast %192 : vector<2x1xf32> to vector<2x16xf32>
    %194 = vector.broadcast %36 : vector<1x16xf32> to vector<2x16xf32>
    %195 = arith.mulf %193, %194 : vector<2x16xf32>
    %196 = arith.addf %191, %195 : vector<2x16xf32>
    %197 = vector.extract_strided_slice %187 {offsets = [0, 2], sizes = [2, 1], strides = [1, 1]} : vector<2x4xf32> to vector<2x1xf32>
    %198 = vector.broadcast %197 : vector<2x1xf32> to vector<2x16xf32>
    %199 = vector.broadcast %37 : vector<1x16xf32> to vector<2x16xf32>
    %200 = arith.mulf %198, %199 : vector<2x16xf32>
    %201 = arith.addf %196, %200 : vector<2x16xf32>
    %202 = vector.extract_strided_slice %187 {offsets = [0, 3], sizes = [2, 1], strides = [1, 1]} : vector<2x4xf32> to vector<2x1xf32>
    %203 = vector.broadcast %202 : vector<2x1xf32> to vector<2x16xf32>
    %204 = vector.broadcast %38 : vector<1x16xf32> to vector<2x16xf32>
    %205 = arith.mulf %203, %204 : vector<2x16xf32>
    %206 = arith.addf %201, %205 : vector<2x16xf32>
    %207 = arith.addf %186, %206 : vector<2x16xf32>
    %208 = vector.extract_strided_slice %207 {offsets = [0, 0], sizes = [2, 12], strides = [1, 1]} : vector<2x16xf32> to vector<2x12xf32>
    %209 = arith.negf %208 : vector<2x12xf32>
    %210 = math.exp %209 : vector<2x12xf32>
    %cst_59 = arith.constant 1.000000e+00 : f32
    %211 = vector.broadcast %cst_59 : f32 to vector<2x12xf32>
    %212 = arith.addf %211, %210 : vector<2x12xf32>
    %213 = arith.divf %211, %212 : vector<2x12xf32>
    %214 = vector.extract_strided_slice %207 {offsets = [0, 12], sizes = [2, 4], strides = [1, 1]} : vector<2x16xf32> to vector<2x4xf32>
    %215 = math.tanh %214 : vector<2x4xf32>
    %216 = vector.extract_strided_slice %213 {offsets = [0, 0], sizes = [2, 4], strides = [1, 1]} : vector<2x12xf32> to vector<2x4xf32>
    %217 = vector.extract_strided_slice %213 {offsets = [0, 4], sizes = [2, 4], strides = [1, 1]} : vector<2x12xf32> to vector<2x4xf32>
    %218 = vector.extract_strided_slice %213 {offsets = [0, 8], sizes = [2, 4], strides = [1, 1]} : vector<2x12xf32> to vector<2x4xf32>
    %c0_60 = arith.constant 0 : index
    %c0_61 = arith.constant 0 : index
    %219 = vector.load %arg9[%c0_60, %c0_61] : memref<2x4xf32, #tpu.memory_space<vmem>>, vector<2x4xf32>
    %220 = arith.mulf %217, %219 : vector<2x4xf32>
    %221 = arith.mulf %216, %215 : vector<2x4xf32>
    %222 = arith.addf %220, %221 : vector<2x4xf32>
    %223 = math.tanh %222 : vector<2x4xf32>
    %224 = arith.mulf %218, %223 : vector<2x4xf32>
    %c0_62 = arith.constant 0 : index
    %c0_63 = arith.constant 0 : index
    %225 = vector.load %arg9[%c0_62, %c0_63] : memref<2x4xf32, #tpu.memory_space<vmem>>, vector<2x4xf32>
    tpu.vector_store %arg9[%c0_62, %c0_63], %222 {strides = array<i32>} : memref<2x4xf32, #tpu.memory_space<vmem>>, vector<2x4xf32>,
    %c0_64 = arith.constant 0 : index
    %c0_65 = arith.constant 0 : index
    %226 = vector.load %arg8[%c0_64, %c0_65] : memref<2x4xf32, #tpu.memory_space<vmem>>, vector<2x4xf32>
    tpu.vector_store %arg8[%c0_64, %c0_65], %224 {strides = array<i32>} : memref<2x4xf32, #tpu.memory_space<vmem>>, vector<2x4xf32>,
    %227 = arith.index_cast %c3_i32 : i32 to index
    %c0_66 = arith.constant 0 : index
    %c0_67 = arith.constant 0 : index
    %228 = vector.load %arg7[%227, %c0_66, %c0_67] : memref<16x2x4xf32, #tpu.memory_space<vmem>>, vector<1x2x4xf32>
    %229 = vector.shape_cast %228 : vector<1x2x4xf32> to vector<2x4xf32>
    %230 = vector.shape_cast %224 : vector<2x4xf32> to vector<1x2x4xf32>
    tpu.vector_store %arg7[%227, %c0_66, %c0_67], %230 {strides = array<i32>} : memref<16x2x4xf32, #tpu.memory_space<vmem>>, vector<1x2x4xf32>,
    %c4_i32 = arith.constant 4 : i32
    %231 = arith.index_cast %c4_i32 : i32 to index
    %c0_68 = arith.constant 0 : index
    %c0_69 = arith.constant 0 : index
    %232 = vector.load %arg6[%231, %c0_68, %c0_69] : memref<16x2x16xf32, #tpu.memory_space<vmem>>, vector<1x2x16xf32>
    %233 = vector.shape_cast %232 : vector<1x2x16xf32> to vector<2x16xf32>
    %c0_70 = arith.constant 0 : index
    %c0_71 = arith.constant 0 : index
    %234 = vector.load %arg8[%c0_70, %c0_71] : memref<2x4xf32, #tpu.memory_space<vmem>>, vector<2x4xf32>
    %235 = vector.extract_strided_slice %234 {offsets = [0, 0], sizes = [2, 1], strides = [1, 1]} : vector<2x4xf32> to vector<2x1xf32>
    %236 = vector.broadcast %235 : vector<2x1xf32> to vector<2x16xf32>
    %237 = vector.broadcast %35 : vector<1x16xf32> to vector<2x16xf32>
    %238 = arith.mulf %236, %237 : vector<2x16xf32>
    %239 = vector.extract_strided_slice %234 {offsets = [0, 1], sizes = [2, 1], strides = [1, 1]} : vector<2x4xf32> to vector<2x1xf32>
    %240 = vector.broadcast %239 : vector<2x1xf32> to vector<2x16xf32>
    %241 = vector.broadcast %36 : vector<1x16xf32> to vector<2x16xf32>
    %242 = arith.mulf %240, %241 : vector<2x16xf32>
    %243 = arith.addf %238, %242 : vector<2x16xf32>
    %244 = vector.extract_strided_slice %234 {offsets = [0, 2], sizes = [2, 1], strides = [1, 1]} : vector<2x4xf32> to vector<2x1xf32>
    %245 = vector.broadcast %244 : vector<2x1xf32> to vector<2x16xf32>
    %246 = vector.broadcast %37 : vector<1x16xf32> to vector<2x16xf32>
    %247 = arith.mulf %245, %246 : vector<2x16xf32>
    %248 = arith.addf %243, %247 : vector<2x16xf32>
    %249 = vector.extract_strided_slice %234 {offsets = [0, 3], sizes = [2, 1], strides = [1, 1]} : vector<2x4xf32> to vector<2x1xf32>
    %250 = vector.broadcast %249 : vector<2x1xf32> to vector<2x16xf32>
    %251 = vector.broadcast %38 : vector<1x16xf32> to vector<2x16xf32>
    %252 = arith.mulf %250, %251 : vector<2x16xf32>
    %253 = arith.addf %248, %252 : vector<2x16xf32>
    %254 = arith.addf %233, %253 : vector<2x16xf32>
    %255 = vector.extract_strided_slice %254 {offsets = [0, 0], sizes = [2, 12], strides = [1, 1]} : vector<2x16xf32> to vector<2x12xf32>
    %256 = arith.negf %255 : vector<2x12xf32>
    %257 = math.exp %256 : vector<2x12xf32>
    %cst_72 = arith.constant 1.000000e+00 : f32
    %258 = vector.broadcast %cst_72 : f32 to vector<2x12xf32>
    %259 = arith.addf %258, %257 : vector<2x12xf32>
    %260 = arith.divf %258, %259 : vector<2x12xf32>
    %261 = vector.extract_strided_slice %254 {offsets = [0, 12], sizes = [2, 4], strides = [1, 1]} : vector<2x16xf32> to vector<2x4xf32>
    %262 = math.tanh %261 : vector<2x4xf32>
    %263 = vector.extract_strided_slice %260 {offsets = [0, 0], sizes = [2, 4], strides = [1, 1]} : vector<2x12xf32> to vector<2x4xf32>
    %264 = vector.extract_strided_slice %260 {offsets = [0, 4], sizes = [2, 4], strides = [1, 1]} : vector<2x12xf32> to vector<2x4xf32>
    %265 = vector.extract_strided_slice %260 {offsets = [0, 8], sizes = [2, 4], strides = [1, 1]} : vector<2x12xf32> to vector<2x4xf32>
    %c0_73 = arith.constant 0 : index
    %c0_74 = arith.constant 0 : index
    %266 = vector.load %arg9[%c0_73, %c0_74] : memref<2x4xf32, #tpu.memory_space<vmem>>, vector<2x4xf32>
    %267 = arith.mulf %264, %266 : vector<2x4xf32>
    %268 = arith.mulf %263, %262 : vector<2x4xf32>
    %269 = arith.addf %267, %268 : vector<2x4xf32>
    %270 = math.tanh %269 : vector<2x4xf32>
    %271 = arith.mulf %265, %270 : vector<2x4xf32>
    %c0_75 = arith.constant 0 : index
    %c0_76 = arith.constant 0 : index
    %272 = vector.load %arg9[%c0_75, %c0_76] : memref<2x4xf32, #tpu.memory_space<vmem>>, vector<2x4xf32>
    tpu.vector_store %arg9[%c0_75, %c0_76], %269 {strides = array<i32>} : memref<2x4xf32, #tpu.memory_space<vmem>>, vector<2x4xf32>,
    %c0_77 = arith.constant 0 : index
    %c0_78 = arith.constant 0 : index
    %273 = vector.load %arg8[%c0_77, %c0_78] : memref<2x4xf32, #tpu.memory_space<vmem>>, vector<2x4xf32>
    tpu.vector_store %arg8[%c0_77, %c0_78], %271 {strides = array<i32>} : memref<2x4xf32, #tpu.memory_space<vmem>>, vector<2x4xf32>,
    %274 = arith.index_cast %c4_i32 : i32 to index
    %c0_79 = arith.constant 0 : index
    %c0_80 = arith.constant 0 : index
    %275 = vector.load %arg7[%274, %c0_79, %c0_80] : memref<16x2x4xf32, #tpu.memory_space<vmem>>, vector<1x2x4xf32>
    %276 = vector.shape_cast %275 : vector<1x2x4xf32> to vector<2x4xf32>
    %277 = vector.shape_cast %271 : vector<2x4xf32> to vector<1x2x4xf32>
    tpu.vector_store %arg7[%274, %c0_79, %c0_80], %277 {strides = array<i32>} : memref<16x2x4xf32, #tpu.memory_space<vmem>>, vector<1x2x4xf32>,
    %c5_i32 = arith.constant 5 : i32
    %278 = arith.index_cast %c5_i32 : i32 to index
    %c0_81 = arith.constant 0 : index
    %c0_82 = arith.constant 0 : index
    %279 = vector.load %arg6[%278, %c0_81, %c0_82] : memref<16x2x16xf32, #tpu.memory_space<vmem>>, vector<1x2x16xf32>
    %280 = vector.shape_cast %279 : vector<1x2x16xf32> to vector<2x16xf32>
    %c0_83 = arith.constant 0 : index
    %c0_84 = arith.constant 0 : index
    %281 = vector.load %arg8[%c0_83, %c0_84] : memref<2x4xf32, #tpu.memory_space<vmem>>, vector<2x4xf32>
    %282 = vector.extract_strided_slice %281 {offsets = [0, 0], sizes = [2, 1], strides = [1, 1]} : vector<2x4xf32> to vector<2x1xf32>
    %283 = vector.broadcast %282 : vector<2x1xf32> to vector<2x16xf32>
    %284 = vector.broadcast %35 : vector<1x16xf32> to vector<2x16xf32>
    %285 = arith.mulf %283, %284 : vector<2x16xf32>
    %286 = vector.extract_strided_slice %281 {offsets = [0, 1], sizes = [2, 1], strides = [1, 1]} : vector<2x4xf32> to vector<2x1xf32>
    %287 = vector.broadcast %286 : vector<2x1xf32> to vector<2x16xf32>
    %288 = vector.broadcast %36 : vector<1x16xf32> to vector<2x16xf32>
    %289 = arith.mulf %287, %288 : vector<2x16xf32>
    %290 = arith.addf %285, %289 : vector<2x16xf32>
    %291 = vector.extract_strided_slice %281 {offsets = [0, 2], sizes = [2, 1], strides = [1, 1]} : vector<2x4xf32> to vector<2x1xf32>
    %292 = vector.broadcast %291 : vector<2x1xf32> to vector<2x16xf32>
    %293 = vector.broadcast %37 : vector<1x16xf32> to vector<2x16xf32>
    %294 = arith.mulf %292, %293 : vector<2x16xf32>
    %295 = arith.addf %290, %294 : vector<2x16xf32>
    %296 = vector.extract_strided_slice %281 {offsets = [0, 3], sizes = [2, 1], strides = [1, 1]} : vector<2x4xf32> to vector<2x1xf32>
    %297 = vector.broadcast %296 : vector<2x1xf32> to vector<2x16xf32>
    %298 = vector.broadcast %38 : vector<1x16xf32> to vector<2x16xf32>
    %299 = arith.mulf %297, %298 : vector<2x16xf32>
    %300 = arith.addf %295, %299 : vector<2x16xf32>
    %301 = arith.addf %280, %300 : vector<2x16xf32>
    %302 = vector.extract_strided_slice %301 {offsets = [0, 0], sizes = [2, 12], strides = [1, 1]} : vector<2x16xf32> to vector<2x12xf32>
    %303 = arith.negf %302 : vector<2x12xf32>
    %304 = math.exp %303 : vector<2x12xf32>
    %cst_85 = arith.constant 1.000000e+00 : f32
    %305 = vector.broadcast %cst_85 : f32 to vector<2x12xf32>
    %306 = arith.addf %305, %304 : vector<2x12xf32>
    %307 = arith.divf %305, %306 : vector<2x12xf32>
    %308 = vector.extract_strided_slice %301 {offsets = [0, 12], sizes = [2, 4], strides = [1, 1]} : vector<2x16xf32> to vector<2x4xf32>
    %309 = math.tanh %308 : vector<2x4xf32>
    %310 = vector.extract_strided_slice %307 {offsets = [0, 0], sizes = [2, 4], strides = [1, 1]} : vector<2x12xf32> to vector<2x4xf32>
    %311 = vector.extract_strided_slice %307 {offsets = [0, 4], sizes = [2, 4], strides = [1, 1]} : vector<2x12xf32> to vector<2x4xf32>
    %312 = vector.extract_strided_slice %307 {offsets = [0, 8], sizes = [2, 4], strides = [1, 1]} : vector<2x12xf32> to vector<2x4xf32>
    %c0_86 = arith.constant 0 : index
    %c0_87 = arith.constant 0 : index
    %313 = vector.load %arg9[%c0_86, %c0_87] : memref<2x4xf32, #tpu.memory_space<vmem>>, vector<2x4xf32>
    %314 = arith.mulf %311, %313 : vector<2x4xf32>
    %315 = arith.mulf %310, %309 : vector<2x4xf32>
    %316 = arith.addf %314, %315 : vector<2x4xf32>
    %317 = math.tanh %316 : vector<2x4xf32>
    %318 = arith.mulf %312, %317 : vector<2x4xf32>
    %c0_88 = arith.constant 0 : index
    %c0_89 = arith.constant 0 : index
    %319 = vector.load %arg9[%c0_88, %c0_89] : memref<2x4xf32, #tpu.memory_space<vmem>>, vector<2x4xf32>
    tpu.vector_store %arg9[%c0_88, %c0_89], %316 {strides = array<i32>} : memref<2x4xf32, #tpu.memory_space<vmem>>, vector<2x4xf32>,
    %c0_90 = arith.constant 0 : index
    %c0_91 = arith.constant 0 : index
    %320 = vector.load %arg8[%c0_90, %c0_91] : memref<2x4xf32, #tpu.memory_space<vmem>>, vector<2x4xf32>
    tpu.vector_store %arg8[%c0_90, %c0_91], %318 {strides = array<i32>} : memref<2x4xf32, #tpu.memory_space<vmem>>, vector<2x4xf32>,
    %321 = arith.index_cast %c5_i32 : i32 to index
    %c0_92 = arith.constant 0 : index
    %c0_93 = arith.constant 0 : index
    %322 = vector.load %arg7[%321, %c0_92, %c0_93] : memref<16x2x4xf32, #tpu.memory_space<vmem>>, vector<1x2x4xf32>
    %323 = vector.shape_cast %322 : vector<1x2x4xf32> to vector<2x4xf32>
    %324 = vector.shape_cast %318 : vector<2x4xf32> to vector<1x2x4xf32>
    tpu.vector_store %arg7[%321, %c0_92, %c0_93], %324 {strides = array<i32>} : memref<16x2x4xf32, #tpu.memory_space<vmem>>, vector<1x2x4xf32>,
    %c6_i32 = arith.constant 6 : i32
    %325 = arith.index_cast %c6_i32 : i32 to index
    %c0_94 = arith.constant 0 : index
    %c0_95 = arith.constant 0 : index
    %326 = vector.load %arg6[%325, %c0_94, %c0_95] : memref<16x2x16xf32, #tpu.memory_space<vmem>>, vector<1x2x16xf32>
    %327 = vector.shape_cast %326 : vector<1x2x16xf32> to vector<2x16xf32>
    %c0_96 = arith.constant 0 : index
    %c0_97 = arith.constant 0 : index
    %328 = vector.load %arg8[%c0_96, %c0_97] : memref<2x4xf32, #tpu.memory_space<vmem>>, vector<2x4xf32>
    %329 = vector.extract_strided_slice %328 {offsets = [0, 0], sizes = [2, 1], strides = [1, 1]} : vector<2x4xf32> to vector<2x1xf32>
    %330 = vector.broadcast %329 : vector<2x1xf32> to vector<2x16xf32>
    %331 = vector.broadcast %35 : vector<1x16xf32> to vector<2x16xf32>
    %332 = arith.mulf %330, %331 : vector<2x16xf32>
    %333 = vector.extract_strided_slice %328 {offsets = [0, 1], sizes = [2, 1], strides = [1, 1]} : vector<2x4xf32> to vector<2x1xf32>
    %334 = vector.broadcast %333 : vector<2x1xf32> to vector<2x16xf32>
    %335 = vector.broadcast %36 : vector<1x16xf32> to vector<2x16xf32>
    %336 = arith.mulf %334, %335 : vector<2x16xf32>
    %337 = arith.addf %332, %336 : vector<2x16xf32>
    %338 = vector.extract_strided_slice %328 {offsets = [0, 2], sizes = [2, 1], strides = [1, 1]} : vector<2x4xf32> to vector<2x1xf32>
    %339 = vector.broadcast %338 : vector<2x1xf32> to vector<2x16xf32>
    %340 = vector.broadcast %37 : vector<1x16xf32> to vector<2x16xf32>
    %341 = arith.mulf %339, %340 : vector<2x16xf32>
    %342 = arith.addf %337, %341 : vector<2x16xf32>
    %343 = vector.extract_strided_slice %328 {offsets = [0, 3], sizes = [2, 1], strides = [1, 1]} : vector<2x4xf32> to vector<2x1xf32>
    %344 = vector.broadcast %343 : vector<2x1xf32> to vector<2x16xf32>
    %345 = vector.broadcast %38 : vector<1x16xf32> to vector<2x16xf32>
    %346 = arith.mulf %344, %345 : vector<2x16xf32>
    %347 = arith.addf %342, %346 : vector<2x16xf32>
    %348 = arith.addf %327, %347 : vector<2x16xf32>
    %349 = vector.extract_strided_slice %348 {offsets = [0, 0], sizes = [2, 12], strides = [1, 1]} : vector<2x16xf32> to vector<2x12xf32>
    %350 = arith.negf %349 : vector<2x12xf32>
    %351 = math.exp %350 : vector<2x12xf32>
    %cst_98 = arith.constant 1.000000e+00 : f32
    %352 = vector.broadcast %cst_98 : f32 to vector<2x12xf32>
    %353 = arith.addf %352, %351 : vector<2x12xf32>
    %354 = arith.divf %352, %353 : vector<2x12xf32>
    %355 = vector.extract_strided_slice %348 {offsets = [0, 12], sizes = [2, 4], strides = [1, 1]} : vector<2x16xf32> to vector<2x4xf32>
    %356 = math.tanh %355 : vector<2x4xf32>
    %357 = vector.extract_strided_slice %354 {offsets = [0, 0], sizes = [2, 4], strides = [1, 1]} : vector<2x12xf32> to vector<2x4xf32>
    %358 = vector.extract_strided_slice %354 {offsets = [0, 4], sizes = [2, 4], strides = [1, 1]} : vector<2x12xf32> to vector<2x4xf32>
    %359 = vector.extract_strided_slice %354 {offsets = [0, 8], sizes = [2, 4], strides = [1, 1]} : vector<2x12xf32> to vector<2x4xf32>
    %c0_99 = arith.constant 0 : index
    %c0_100 = arith.constant 0 : index
    %360 = vector.load %arg9[%c0_99, %c0_100] : memref<2x4xf32, #tpu.memory_space<vmem>>, vector<2x4xf32>
    %361 = arith.mulf %358, %360 : vector<2x4xf32>
    %362 = arith.mulf %357, %356 : vector<2x4xf32>
    %363 = arith.addf %361, %362 : vector<2x4xf32>
    %364 = math.tanh %363 : vector<2x4xf32>
    %365 = arith.mulf %359, %364 : vector<2x4xf32>
    %c0_101 = arith.constant 0 : index
    %c0_102 = arith.constant 0 : index
    %366 = vector.load %arg9[%c0_101, %c0_102] : memref<2x4xf32, #tpu.memory_space<vmem>>, vector<2x4xf32>
    tpu.vector_store %arg9[%c0_101, %c0_102], %363 {strides = array<i32>} : memref<2x4xf32, #tpu.memory_space<vmem>>, vector<2x4xf32>,
    %c0_103 = arith.constant 0 : index
    %c0_104 = arith.constant 0 : index
    %367 = vector.load %arg8[%c0_103, %c0_104] : memref<2x4xf32, #tpu.memory_space<vmem>>, vector<2x4xf32>
    tpu.vector_store %arg8[%c0_103, %c0_104], %365 {strides = array<i32>} : memref<2x4xf32, #tpu.memory_space<vmem>>, vector<2x4xf32>,
    %368 = arith.index_cast %c6_i32 : i32 to index
    %c0_105 = arith.constant 0 : index
    %c0_106 = arith.constant 0 : index
    %369 = vector.load %arg7[%368, %c0_105, %c0_106] : memref<16x2x4xf32, #tpu.memory_space<vmem>>, vector<1x2x4xf32>
    %370 = vector.shape_cast %369 : vector<1x2x4xf32> to vector<2x4xf32>
    %371 = vector.shape_cast %365 : vector<2x4xf32> to vector<1x2x4xf32>
    tpu.vector_store %arg7[%368, %c0_105, %c0_106], %371 {strides = array<i32>} : memref<16x2x4xf32, #tpu.memory_space<vmem>>, vector<1x2x4xf32>,
    %c7_i32 = arith.constant 7 : i32
    %372 = arith.index_cast %c7_i32 : i32 to index
    %c0_107 = arith.constant 0 : index
    %c0_108 = arith.constant 0 : index
    %373 = vector.load %arg6[%372, %c0_107, %c0_108] : memref<16x2x16xf32, #tpu.memory_space<vmem>>, vector<1x2x16xf32>
    %374 = vector.shape_cast %373 : vector<1x2x16xf32> to vector<2x16xf32>
    %c0_109 = arith.constant 0 : index
    %c0_110 = arith.constant 0 : index
    %375 = vector.load %arg8[%c0_109, %c0_110] : memref<2x4xf32, #tpu.memory_space<vmem>>, vector<2x4xf32>
    %376 = vector.extract_strided_slice %375 {offsets = [0, 0], sizes = [2, 1], strides = [1, 1]} : vector<2x4xf32> to vector<2x1xf32>
    %377 = vector.broadcast %376 : vector<2x1xf32> to vector<2x16xf32>
    %378 = vector.broadcast %35 : vector<1x16xf32> to vector<2x16xf32>
    %379 = arith.mulf %377, %378 : vector<2x16xf32>
    %380 = vector.extract_strided_slice %375 {offsets = [0, 1], sizes = [2, 1], strides = [1, 1]} : vector<2x4xf32> to vector<2x1xf32>
    %381 = vector.broadcast %380 : vector<2x1xf32> to vector<2x16xf32>
    %382 = vector.broadcast %36 : vector<1x16xf32> to vector<2x16xf32>
    %383 = arith.mulf %381, %382 : vector<2x16xf32>
    %384 = arith.addf %379, %383 : vector<2x16xf32>
    %385 = vector.extract_strided_slice %375 {offsets = [0, 2], sizes = [2, 1], strides = [1, 1]} : vector<2x4xf32> to vector<2x1xf32>
    %386 = vector.broadcast %385 : vector<2x1xf32> to vector<2x16xf32>
    %387 = vector.broadcast %37 : vector<1x16xf32> to vector<2x16xf32>
    %388 = arith.mulf %386, %387 : vector<2x16xf32>
    %389 = arith.addf %384, %388 : vector<2x16xf32>
    %390 = vector.extract_strided_slice %375 {offsets = [0, 3], sizes = [2, 1], strides = [1, 1]} : vector<2x4xf32> to vector<2x1xf32>
    %391 = vector.broadcast %390 : vector<2x1xf32> to vector<2x16xf32>
    %392 = vector.broadcast %38 : vector<1x16xf32> to vector<2x16xf32>
    %393 = arith.mulf %391, %392 : vector<2x16xf32>
    %394 = arith.addf %389, %393 : vector<2x16xf32>
    %395 = arith.addf %374, %394 : vector<2x16xf32>
    %396 = vector.extract_strided_slice %395 {offsets = [0, 0], sizes = [2, 12], strides = [1, 1]} : vector<2x16xf32> to vector<2x12xf32>
    %397 = arith.negf %396 : vector<2x12xf32>
    %398 = math.exp %397 : vector<2x12xf32>
    %cst_111 = arith.constant 1.000000e+00 : f32
    %399 = vector.broadcast %cst_111 : f32 to vector<2x12xf32>
    %400 = arith.addf %399, %398 : vector<2x12xf32>
    %401 = arith.divf %399, %400 : vector<2x12xf32>
    %402 = vector.extract_strided_slice %395 {offsets = [0, 12], sizes = [2, 4], strides = [1, 1]} : vector<2x16xf32> to vector<2x4xf32>
    %403 = math.tanh %402 : vector<2x4xf32>
    %404 = vector.extract_strided_slice %401 {offsets = [0, 0], sizes = [2, 4], strides = [1, 1]} : vector<2x12xf32> to vector<2x4xf32>
    %405 = vector.extract_strided_slice %401 {offsets = [0, 4], sizes = [2, 4], strides = [1, 1]} : vector<2x12xf32> to vector<2x4xf32>
    %406 = vector.extract_strided_slice %401 {offsets = [0, 8], sizes = [2, 4], strides = [1, 1]} : vector<2x12xf32> to vector<2x4xf32>
    %c0_112 = arith.constant 0 : index
    %c0_113 = arith.constant 0 : index
    %407 = vector.load %arg9[%c0_112, %c0_113] : memref<2x4xf32, #tpu.memory_space<vmem>>, vector<2x4xf32>
    %408 = arith.mulf %405, %407 : vector<2x4xf32>
    %409 = arith.mulf %404, %403 : vector<2x4xf32>
    %410 = arith.addf %408, %409 : vector<2x4xf32>
    %411 = math.tanh %410 : vector<2x4xf32>
    %412 = arith.mulf %406, %411 : vector<2x4xf32>
    %c0_114 = arith.constant 0 : index
    %c0_115 = arith.constant 0 : index
    %413 = vector.load %arg9[%c0_114, %c0_115] : memref<2x4xf32, #tpu.memory_space<vmem>>, vector<2x4xf32>
    tpu.vector_store %arg9[%c0_114, %c0_115], %410 {strides = array<i32>} : memref<2x4xf32, #tpu.memory_space<vmem>>, vector<2x4xf32>,
    %c0_116 = arith.constant 0 : index
    %c0_117 = arith.constant 0 : index
    %414 = vector.load %arg8[%c0_116, %c0_117] : memref<2x4xf32, #tpu.memory_space<vmem>>, vector<2x4xf32>
    tpu.vector_store %arg8[%c0_116, %c0_117], %412 {strides = array<i32>} : memref<2x4xf32, #tpu.memory_space<vmem>>, vector<2x4xf32>,
    %415 = arith.index_cast %c7_i32 : i32 to index
    %c0_118 = arith.constant 0 : index
    %c0_119 = arith.constant 0 : index
    %416 = vector.load %arg7[%415, %c0_118, %c0_119] : memref<16x2x4xf32, #tpu.memory_space<vmem>>, vector<1x2x4xf32>
    %417 = vector.shape_cast %416 : vector<1x2x4xf32> to vector<2x4xf32>
    %418 = vector.shape_cast %412 : vector<2x4xf32> to vector<1x2x4xf32>
    tpu.vector_store %arg7[%415, %c0_118, %c0_119], %418 {strides = array<i32>} : memref<16x2x4xf32, #tpu.memory_space<vmem>>, vector<1x2x4xf32>,
    %c8_i32 = arith.constant 8 : i32
    %419 = arith.index_cast %c8_i32 : i32 to index
    %c0_120 = arith.constant 0 : index
    %c0_121 = arith.constant 0 : index
    %420 = vector.load %arg6[%419, %c0_120, %c0_121] : memref<16x2x16xf32, #tpu.memory_space<vmem>>, vector<1x2x16xf32>
    %421 = vector.shape_cast %420 : vector<1x2x16xf32> to vector<2x16xf32>
    %c0_122 = arith.constant 0 : index
    %c0_123 = arith.constant 0 : index
    %422 = vector.load %arg8[%c0_122, %c0_123] : memref<2x4xf32, #tpu.memory_space<vmem>>, vector<2x4xf32>
    %423 = vector.extract_strided_slice %422 {offsets = [0, 0], sizes = [2, 1], strides = [1, 1]} : vector<2x4xf32> to vector<2x1xf32>
    %424 = vector.broadcast %423 : vector<2x1xf32> to vector<2x16xf32>
    %425 = vector.broadcast %35 : vector<1x16xf32> to vector<2x16xf32>
    %426 = arith.mulf %424, %425 : vector<2x16xf32>
    %427 = vector.extract_strided_slice %422 {offsets = [0, 1], sizes = [2, 1], strides = [1, 1]} : vector<2x4xf32> to vector<2x1xf32>
    %428 = vector.broadcast %427 : vector<2x1xf32> to vector<2x16xf32>
    %429 = vector.broadcast %36 : vector<1x16xf32> to vector<2x16xf32>
    %430 = arith.mulf %428, %429 : vector<2x16xf32>
    %431 = arith.addf %426, %430 : vector<2x16xf32>
    %432 = vector.extract_strided_slice %422 {offsets = [0, 2], sizes = [2, 1], strides = [1, 1]} : vector<2x4xf32> to vector<2x1xf32>
    %433 = vector.broadcast %432 : vector<2x1xf32> to vector<2x16xf32>
    %434 = vector.broadcast %37 : vector<1x16xf32> to vector<2x16xf32>
    %435 = arith.mulf %433, %434 : vector<2x16xf32>
    %436 = arith.addf %431, %435 : vector<2x16xf32>
    %437 = vector.extract_strided_slice %422 {offsets = [0, 3], sizes = [2, 1], strides = [1, 1]} : vector<2x4xf32> to vector<2x1xf32>
    %438 = vector.broadcast %437 : vector<2x1xf32> to vector<2x16xf32>
    %439 = vector.broadcast %38 : vector<1x16xf32> to vector<2x16xf32>
    %440 = arith.mulf %438, %439 : vector<2x16xf32>
    %441 = arith.addf %436, %440 : vector<2x16xf32>
    %442 = arith.addf %421, %441 : vector<2x16xf32>
    %443 = vector.extract_strided_slice %442 {offsets = [0, 0], sizes = [2, 12], strides = [1, 1]} : vector<2x16xf32> to vector<2x12xf32>
    %444 = arith.negf %443 : vector<2x12xf32>
    %445 = math.exp %444 : vector<2x12xf32>
    %cst_124 = arith.constant 1.000000e+00 : f32
    %446 = vector.broadcast %cst_124 : f32 to vector<2x12xf32>
    %447 = arith.addf %446, %445 : vector<2x12xf32>
    %448 = arith.divf %446, %447 : vector<2x12xf32>
    %449 = vector.extract_strided_slice %442 {offsets = [0, 12], sizes = [2, 4], strides = [1, 1]} : vector<2x16xf32> to vector<2x4xf32>
    %450 = math.tanh %449 : vector<2x4xf32>
    %451 = vector.extract_strided_slice %448 {offsets = [0, 0], sizes = [2, 4], strides = [1, 1]} : vector<2x12xf32> to vector<2x4xf32>
    %452 = vector.extract_strided_slice %448 {offsets = [0, 4], sizes = [2, 4], strides = [1, 1]} : vector<2x12xf32> to vector<2x4xf32>
    %453 = vector.extract_strided_slice %448 {offsets = [0, 8], sizes = [2, 4], strides = [1, 1]} : vector<2x12xf32> to vector<2x4xf32>
    %c0_125 = arith.constant 0 : index
    %c0_126 = arith.constant 0 : index
    %454 = vector.load %arg9[%c0_125, %c0_126] : memref<2x4xf32, #tpu.memory_space<vmem>>, vector<2x4xf32>
    %455 = arith.mulf %452, %454 : vector<2x4xf32>
    %456 = arith.mulf %451, %450 : vector<2x4xf32>
    %457 = arith.addf %455, %456 : vector<2x4xf32>
    %458 = math.tanh %457 : vector<2x4xf32>
    %459 = arith.mulf %453, %458 : vector<2x4xf32>
    %c0_127 = arith.constant 0 : index
    %c0_128 = arith.constant 0 : index
    %460 = vector.load %arg9[%c0_127, %c0_128] : memref<2x4xf32, #tpu.memory_space<vmem>>, vector<2x4xf32>
    tpu.vector_store %arg9[%c0_127, %c0_128], %457 {strides = array<i32>} : memref<2x4xf32, #tpu.memory_space<vmem>>, vector<2x4xf32>,
    %c0_129 = arith.constant 0 : index
    %c0_130 = arith.constant 0 : index
    %461 = vector.load %arg8[%c0_129, %c0_130] : memref<2x4xf32, #tpu.memory_space<vmem>>, vector<2x4xf32>
    tpu.vector_store %arg8[%c0_129, %c0_130], %459 {strides = array<i32>} : memref<2x4xf32, #tpu.memory_space<vmem>>, vector<2x4xf32>,
    %462 = arith.index_cast %c8_i32 : i32 to index
    %c0_131 = arith.constant 0 : index
    %c0_132 = arith.constant 0 : index
    %463 = vector.load %arg7[%462, %c0_131, %c0_132] : memref<16x2x4xf32, #tpu.memory_space<vmem>>, vector<1x2x4xf32>
    %464 = vector.shape_cast %463 : vector<1x2x4xf32> to vector<2x4xf32>
    %465 = vector.shape_cast %459 : vector<2x4xf32> to vector<1x2x4xf32>
    tpu.vector_store %arg7[%462, %c0_131, %c0_132], %465 {strides = array<i32>} : memref<16x2x4xf32, #tpu.memory_space<vmem>>, vector<1x2x4xf32>,
    %c9_i32 = arith.constant 9 : i32
    %466 = arith.index_cast %c9_i32 : i32 to index
    %c0_133 = arith.constant 0 : index
    %c0_134 = arith.constant 0 : index
    %467 = vector.load %arg6[%466, %c0_133, %c0_134] : memref<16x2x16xf32, #tpu.memory_space<vmem>>, vector<1x2x16xf32>
    %468 = vector.shape_cast %467 : vector<1x2x16xf32> to vector<2x16xf32>
    %c0_135 = arith.constant 0 : index
    %c0_136 = arith.constant 0 : index
    %469 = vector.load %arg8[%c0_135, %c0_136] : memref<2x4xf32, #tpu.memory_space<vmem>>, vector<2x4xf32>
    %470 = vector.extract_strided_slice %469 {offsets = [0, 0], sizes = [2, 1], strides = [1, 1]} : vector<2x4xf32> to vector<2x1xf32>
    %471 = vector.broadcast %470 : vector<2x1xf32> to vector<2x16xf32>
    %472 = vector.broadcast %35 : vector<1x16xf32> to vector<2x16xf32>
    %473 = arith.mulf %471, %472 : vector<2x16xf32>
    %474 = vector.extract_strided_slice %469 {offsets = [0, 1], sizes = [2, 1], strides = [1, 1]} : vector<2x4xf32> to vector<2x1xf32>
    %475 = vector.broadcast %474 : vector<2x1xf32> to vector<2x16xf32>
    %476 = vector.broadcast %36 : vector<1x16xf32> to vector<2x16xf32>
    %477 = arith.mulf %475, %476 : vector<2x16xf32>
    %478 = arith.addf %473, %477 : vector<2x16xf32>
    %479 = vector.extract_strided_slice %469 {offsets = [0, 2], sizes = [2, 1], strides = [1, 1]} : vector<2x4xf32> to vector<2x1xf32>
    %480 = vector.broadcast %479 : vector<2x1xf32> to vector<2x16xf32>
    %481 = vector.broadcast %37 : vector<1x16xf32> to vector<2x16xf32>
    %482 = arith.mulf %480, %481 : vector<2x16xf32>
    %483 = arith.addf %478, %482 : vector<2x16xf32>
    %484 = vector.extract_strided_slice %469 {offsets = [0, 3], sizes = [2, 1], strides = [1, 1]} : vector<2x4xf32> to vector<2x1xf32>
    %485 = vector.broadcast %484 : vector<2x1xf32> to vector<2x16xf32>
    %486 = vector.broadcast %38 : vector<1x16xf32> to vector<2x16xf32>
    %487 = arith.mulf %485, %486 : vector<2x16xf32>
    %488 = arith.addf %483, %487 : vector<2x16xf32>
    %489 = arith.addf %468, %488 : vector<2x16xf32>
    %490 = vector.extract_strided_slice %489 {offsets = [0, 0], sizes = [2, 12], strides = [1, 1]} : vector<2x16xf32> to vector<2x12xf32>
    %491 = arith.negf %490 : vector<2x12xf32>
    %492 = math.exp %491 : vector<2x12xf32>
    %cst_137 = arith.constant 1.000000e+00 : f32
    %493 = vector.broadcast %cst_137 : f32 to vector<2x12xf32>
    %494 = arith.addf %493, %492 : vector<2x12xf32>
    %495 = arith.divf %493, %494 : vector<2x12xf32>
    %496 = vector.extract_strided_slice %489 {offsets = [0, 12], sizes = [2, 4], strides = [1, 1]} : vector<2x16xf32> to vector<2x4xf32>
    %497 = math.tanh %496 : vector<2x4xf32>
    %498 = vector.extract_strided_slice %495 {offsets = [0, 0], sizes = [2, 4], strides = [1, 1]} : vector<2x12xf32> to vector<2x4xf32>
    %499 = vector.extract_strided_slice %495 {offsets = [0, 4], sizes = [2, 4], strides = [1, 1]} : vector<2x12xf32> to vector<2x4xf32>
    %500 = vector.extract_strided_slice %495 {offsets = [0, 8], sizes = [2, 4], strides = [1, 1]} : vector<2x12xf32> to vector<2x4xf32>
    %c0_138 = arith.constant 0 : index
    %c0_139 = arith.constant 0 : index
    %501 = vector.load %arg9[%c0_138, %c0_139] : memref<2x4xf32, #tpu.memory_space<vmem>>, vector<2x4xf32>
    %502 = arith.mulf %499, %501 : vector<2x4xf32>
    %503 = arith.mulf %498, %497 : vector<2x4xf32>
    %504 = arith.addf %502, %503 : vector<2x4xf32>
    %505 = math.tanh %504 : vector<2x4xf32>
    %506 = arith.mulf %500, %505 : vector<2x4xf32>
    %c0_140 = arith.constant 0 : index
    %c0_141 = arith.constant 0 : index
    %507 = vector.load %arg9[%c0_140, %c0_141] : memref<2x4xf32, #tpu.memory_space<vmem>>, vector<2x4xf32>
    tpu.vector_store %arg9[%c0_140, %c0_141], %504 {strides = array<i32>} : memref<2x4xf32, #tpu.memory_space<vmem>>, vector<2x4xf32>,
    %c0_142 = arith.constant 0 : index
    %c0_143 = arith.constant 0 : index
    %508 = vector.load %arg8[%c0_142, %c0_143] : memref<2x4xf32, #tpu.memory_space<vmem>>, vector<2x4xf32>
    tpu.vector_store %arg8[%c0_142, %c0_143], %506 {strides = array<i32>} : memref<2x4xf32, #tpu.memory_space<vmem>>, vector<2x4xf32>,
    %509 = arith.index_cast %c9_i32 : i32 to index
    %c0_144 = arith.constant 0 : index
    %c0_145 = arith.constant 0 : index
    %510 = vector.load %arg7[%509, %c0_144, %c0_145] : memref<16x2x4xf32, #tpu.memory_space<vmem>>, vector<1x2x4xf32>
    %511 = vector.shape_cast %510 : vector<1x2x4xf32> to vector<2x4xf32>
    %512 = vector.shape_cast %506 : vector<2x4xf32> to vector<1x2x4xf32>
    tpu.vector_store %arg7[%509, %c0_144, %c0_145], %512 {strides = array<i32>} : memref<16x2x4xf32, #tpu.memory_space<vmem>>, vector<1x2x4xf32>,
    %c10_i32 = arith.constant 10 : i32
    %513 = arith.index_cast %c10_i32 : i32 to index
    %c0_146 = arith.constant 0 : index
    %c0_147 = arith.constant 0 : index
    %514 = vector.load %arg6[%513, %c0_146, %c0_147] : memref<16x2x16xf32, #tpu.memory_space<vmem>>, vector<1x2x16xf32>
    %515 = vector.shape_cast %514 : vector<1x2x16xf32> to vector<2x16xf32>
    %c0_148 = arith.constant 0 : index
    %c0_149 = arith.constant 0 : index
    %516 = vector.load %arg8[%c0_148, %c0_149] : memref<2x4xf32, #tpu.memory_space<vmem>>, vector<2x4xf32>
    %517 = vector.extract_strided_slice %516 {offsets = [0, 0], sizes = [2, 1], strides = [1, 1]} : vector<2x4xf32> to vector<2x1xf32>
    %518 = vector.broadcast %517 : vector<2x1xf32> to vector<2x16xf32>
    %519 = vector.broadcast %35 : vector<1x16xf32> to vector<2x16xf32>
    %520 = arith.mulf %518, %519 : vector<2x16xf32>
    %521 = vector.extract_strided_slice %516 {offsets = [0, 1], sizes = [2, 1], strides = [1, 1]} : vector<2x4xf32> to vector<2x1xf32>
    %522 = vector.broadcast %521 : vector<2x1xf32> to vector<2x16xf32>
    %523 = vector.broadcast %36 : vector<1x16xf32> to vector<2x16xf32>
    %524 = arith.mulf %522, %523 : vector<2x16xf32>
    %525 = arith.addf %520, %524 : vector<2x16xf32>
    %526 = vector.extract_strided_slice %516 {offsets = [0, 2], sizes = [2, 1], strides = [1, 1]} : vector<2x4xf32> to vector<2x1xf32>
    %527 = vector.broadcast %526 : vector<2x1xf32> to vector<2x16xf32>
    %528 = vector.broadcast %37 : vector<1x16xf32> to vector<2x16xf32>
    %529 = arith.mulf %527, %528 : vector<2x16xf32>
    %530 = arith.addf %525, %529 : vector<2x16xf32>
    %531 = vector.extract_strided_slice %516 {offsets = [0, 3], sizes = [2, 1], strides = [1, 1]} : vector<2x4xf32> to vector<2x1xf32>
    %532 = vector.broadcast %531 : vector<2x1xf32> to vector<2x16xf32>
    %533 = vector.broadcast %38 : vector<1x16xf32> to vector<2x16xf32>
    %534 = arith.mulf %532, %533 : vector<2x16xf32>
    %535 = arith.addf %530, %534 : vector<2x16xf32>
    %536 = arith.addf %515, %535 : vector<2x16xf32>
    %537 = vector.extract_strided_slice %536 {offsets = [0, 0], sizes = [2, 12], strides = [1, 1]} : vector<2x16xf32> to vector<2x12xf32>
    %538 = arith.negf %537 : vector<2x12xf32>
    %539 = math.exp %538 : vector<2x12xf32>
    %cst_150 = arith.constant 1.000000e+00 : f32
    %540 = vector.broadcast %cst_150 : f32 to vector<2x12xf32>
    %541 = arith.addf %540, %539 : vector<2x12xf32>
    %542 = arith.divf %540, %541 : vector<2x12xf32>
    %543 = vector.extract_strided_slice %536 {offsets = [0, 12], sizes = [2, 4], strides = [1, 1]} : vector<2x16xf32> to vector<2x4xf32>
    %544 = math.tanh %543 : vector<2x4xf32>
    %545 = vector.extract_strided_slice %542 {offsets = [0, 0], sizes = [2, 4], strides = [1, 1]} : vector<2x12xf32> to vector<2x4xf32>
    %546 = vector.extract_strided_slice %542 {offsets = [0, 4], sizes = [2, 4], strides = [1, 1]} : vector<2x12xf32> to vector<2x4xf32>
    %547 = vector.extract_strided_slice %542 {offsets = [0, 8], sizes = [2, 4], strides = [1, 1]} : vector<2x12xf32> to vector<2x4xf32>
    %c0_151 = arith.constant 0 : index
    %c0_152 = arith.constant 0 : index
    %548 = vector.load %arg9[%c0_151, %c0_152] : memref<2x4xf32, #tpu.memory_space<vmem>>, vector<2x4xf32>
    %549 = arith.mulf %546, %548 : vector<2x4xf32>
    %550 = arith.mulf %545, %544 : vector<2x4xf32>
    %551 = arith.addf %549, %550 : vector<2x4xf32>
    %552 = math.tanh %551 : vector<2x4xf32>
    %553 = arith.mulf %547, %552 : vector<2x4xf32>
    %c0_153 = arith.constant 0 : index
    %c0_154 = arith.constant 0 : index
    %554 = vector.load %arg9[%c0_153, %c0_154] : memref<2x4xf32, #tpu.memory_space<vmem>>, vector<2x4xf32>
    tpu.vector_store %arg9[%c0_153, %c0_154], %551 {strides = array<i32>} : memref<2x4xf32, #tpu.memory_space<vmem>>, vector<2x4xf32>,
    %c0_155 = arith.constant 0 : index
    %c0_156 = arith.constant 0 : index
    %555 = vector.load %arg8[%c0_155, %c0_156] : memref<2x4xf32, #tpu.memory_space<vmem>>, vector<2x4xf32>
    tpu.vector_store %arg8[%c0_155, %c0_156], %553 {strides = array<i32>} : memref<2x4xf32, #tpu.memory_space<vmem>>, vector<2x4xf32>,
    %556 = arith.index_cast %c10_i32 : i32 to index
    %c0_157 = arith.constant 0 : index
    %c0_158 = arith.constant 0 : index
    %557 = vector.load %arg7[%556, %c0_157, %c0_158] : memref<16x2x4xf32, #tpu.memory_space<vmem>>, vector<1x2x4xf32>
    %558 = vector.shape_cast %557 : vector<1x2x4xf32> to vector<2x4xf32>
    %559 = vector.shape_cast %553 : vector<2x4xf32> to vector<1x2x4xf32>
    tpu.vector_store %arg7[%556, %c0_157, %c0_158], %559 {strides = array<i32>} : memref<16x2x4xf32, #tpu.memory_space<vmem>>, vector<1x2x4xf32>,
    %c11_i32 = arith.constant 11 : i32
    %560 = arith.index_cast %c11_i32 : i32 to index
    %c0_159 = arith.constant 0 : index
    %c0_160 = arith.constant 0 : index
    %561 = vector.load %arg6[%560, %c0_159, %c0_160] : memref<16x2x16xf32, #tpu.memory_space<vmem>>, vector<1x2x16xf32>
    %562 = vector.shape_cast %561 : vector<1x2x16xf32> to vector<2x16xf32>
    %c0_161 = arith.constant 0 : index
    %c0_162 = arith.constant 0 : index
    %563 = vector.load %arg8[%c0_161, %c0_162] : memref<2x4xf32, #tpu.memory_space<vmem>>, vector<2x4xf32>
    %564 = vector.extract_strided_slice %563 {offsets = [0, 0], sizes = [2, 1], strides = [1, 1]} : vector<2x4xf32> to vector<2x1xf32>
    %565 = vector.broadcast %564 : vector<2x1xf32> to vector<2x16xf32>
    %566 = vector.broadcast %35 : vector<1x16xf32> to vector<2x16xf32>
    %567 = arith.mulf %565, %566 : vector<2x16xf32>
    %568 = vector.extract_strided_slice %563 {offsets = [0, 1], sizes = [2, 1], strides = [1, 1]} : vector<2x4xf32> to vector<2x1xf32>
    %569 = vector.broadcast %568 : vector<2x1xf32> to vector<2x16xf32>
    %570 = vector.broadcast %36 : vector<1x16xf32> to vector<2x16xf32>
    %571 = arith.mulf %569, %570 : vector<2x16xf32>
    %572 = arith.addf %567, %571 : vector<2x16xf32>
    %573 = vector.extract_strided_slice %563 {offsets = [0, 2], sizes = [2, 1], strides = [1, 1]} : vector<2x4xf32> to vector<2x1xf32>
    %574 = vector.broadcast %573 : vector<2x1xf32> to vector<2x16xf32>
    %575 = vector.broadcast %37 : vector<1x16xf32> to vector<2x16xf32>
    %576 = arith.mulf %574, %575 : vector<2x16xf32>
    %577 = arith.addf %572, %576 : vector<2x16xf32>
    %578 = vector.extract_strided_slice %563 {offsets = [0, 3], sizes = [2, 1], strides = [1, 1]} : vector<2x4xf32> to vector<2x1xf32>
    %579 = vector.broadcast %578 : vector<2x1xf32> to vector<2x16xf32>
    %580 = vector.broadcast %38 : vector<1x16xf32> to vector<2x16xf32>
    %581 = arith.mulf %579, %580 : vector<2x16xf32>
    %582 = arith.addf %577, %581 : vector<2x16xf32>
    %583 = arith.addf %562, %582 : vector<2x16xf32>
    %584 = vector.extract_strided_slice %583 {offsets = [0, 0], sizes = [2, 12], strides = [1, 1]} : vector<2x16xf32> to vector<2x12xf32>
    %585 = arith.negf %584 : vector<2x12xf32>
    %586 = math.exp %585 : vector<2x12xf32>
    %cst_163 = arith.constant 1.000000e+00 : f32
    %587 = vector.broadcast %cst_163 : f32 to vector<2x12xf32>
    %588 = arith.addf %587, %586 : vector<2x12xf32>
    %589 = arith.divf %587, %588 : vector<2x12xf32>
    %590 = vector.extract_strided_slice %583 {offsets = [0, 12], sizes = [2, 4], strides = [1, 1]} : vector<2x16xf32> to vector<2x4xf32>
    %591 = math.tanh %590 : vector<2x4xf32>
    %592 = vector.extract_strided_slice %589 {offsets = [0, 0], sizes = [2, 4], strides = [1, 1]} : vector<2x12xf32> to vector<2x4xf32>
    %593 = vector.extract_strided_slice %589 {offsets = [0, 4], sizes = [2, 4], strides = [1, 1]} : vector<2x12xf32> to vector<2x4xf32>
    %594 = vector.extract_strided_slice %589 {offsets = [0, 8], sizes = [2, 4], strides = [1, 1]} : vector<2x12xf32> to vector<2x4xf32>
    %c0_164 = arith.constant 0 : index
    %c0_165 = arith.constant 0 : index
    %595 = vector.load %arg9[%c0_164, %c0_165] : memref<2x4xf32, #tpu.memory_space<vmem>>, vector<2x4xf32>
    %596 = arith.mulf %593, %595 : vector<2x4xf32>
    %597 = arith.mulf %592, %591 : vector<2x4xf32>
    %598 = arith.addf %596, %597 : vector<2x4xf32>
    %599 = math.tanh %598 : vector<2x4xf32>
    %600 = arith.mulf %594, %599 : vector<2x4xf32>
    %c0_166 = arith.constant 0 : index
    %c0_167 = arith.constant 0 : index
    %601 = vector.load %arg9[%c0_166, %c0_167] : memref<2x4xf32, #tpu.memory_space<vmem>>, vector<2x4xf32>
    tpu.vector_store %arg9[%c0_166, %c0_167], %598 {strides = array<i32>} : memref<2x4xf32, #tpu.memory_space<vmem>>, vector<2x4xf32>,
    %c0_168 = arith.constant 0 : index
    %c0_169 = arith.constant 0 : index
    %602 = vector.load %arg8[%c0_168, %c0_169] : memref<2x4xf32, #tpu.memory_space<vmem>>, vector<2x4xf32>
    tpu.vector_store %arg8[%c0_168, %c0_169], %600 {strides = array<i32>} : memref<2x4xf32, #tpu.memory_space<vmem>>, vector<2x4xf32>,
    %603 = arith.index_cast %c11_i32 : i32 to index
    %c0_170 = arith.constant 0 : index
    %c0_171 = arith.constant 0 : index
    %604 = vector.load %arg7[%603, %c0_170, %c0_171] : memref<16x2x4xf32, #tpu.memory_space<vmem>>, vector<1x2x4xf32>
    %605 = vector.shape_cast %604 : vector<1x2x4xf32> to vector<2x4xf32>
    %606 = vector.shape_cast %600 : vector<2x4xf32> to vector<1x2x4xf32>
    tpu.vector_store %arg7[%603, %c0_170, %c0_171], %606 {strides = array<i32>} : memref<16x2x4xf32, #tpu.memory_space<vmem>>, vector<1x2x4xf32>,
    %c12_i32 = arith.constant 12 : i32
    %607 = arith.index_cast %c12_i32 : i32 to index
    %c0_172 = arith.constant 0 : index
    %c0_173 = arith.constant 0 : index
    %608 = vector.load %arg6[%607, %c0_172, %c0_173] : memref<16x2x16xf32, #tpu.memory_space<vmem>>, vector<1x2x16xf32>
    %609 = vector.shape_cast %608 : vector<1x2x16xf32> to vector<2x16xf32>
    %c0_174 = arith.constant 0 : index
    %c0_175 = arith.constant 0 : index
    %610 = vector.load %arg8[%c0_174, %c0_175] : memref<2x4xf32, #tpu.memory_space<vmem>>, vector<2x4xf32>
    %611 = vector.extract_strided_slice %610 {offsets = [0, 0], sizes = [2, 1], strides = [1, 1]} : vector<2x4xf32> to vector<2x1xf32>
    %612 = vector.broadcast %611 : vector<2x1xf32> to vector<2x16xf32>
    %613 = vector.broadcast %35 : vector<1x16xf32> to vector<2x16xf32>
    %614 = arith.mulf %612, %613 : vector<2x16xf32>
    %615 = vector.extract_strided_slice %610 {offsets = [0, 1], sizes = [2, 1], strides = [1, 1]} : vector<2x4xf32> to vector<2x1xf32>
    %616 = vector.broadcast %615 : vector<2x1xf32> to vector<2x16xf32>
    %617 = vector.broadcast %36 : vector<1x16xf32> to vector<2x16xf32>
    %618 = arith.mulf %616, %617 : vector<2x16xf32>
    %619 = arith.addf %614, %618 : vector<2x16xf32>
    %620 = vector.extract_strided_slice %610 {offsets = [0, 2], sizes = [2, 1], strides = [1, 1]} : vector<2x4xf32> to vector<2x1xf32>
    %621 = vector.broadcast %620 : vector<2x1xf32> to vector<2x16xf32>
    %622 = vector.broadcast %37 : vector<1x16xf32> to vector<2x16xf32>
    %623 = arith.mulf %621, %622 : vector<2x16xf32>
    %624 = arith.addf %619, %623 : vector<2x16xf32>
    %625 = vector.extract_strided_slice %610 {offsets = [0, 3], sizes = [2, 1], strides = [1, 1]} : vector<2x4xf32> to vector<2x1xf32>
    %626 = vector.broadcast %625 : vector<2x1xf32> to vector<2x16xf32>
    %627 = vector.broadcast %38 : vector<1x16xf32> to vector<2x16xf32>
    %628 = arith.mulf %626, %627 : vector<2x16xf32>
    %629 = arith.addf %624, %628 : vector<2x16xf32>
    %630 = arith.addf %609, %629 : vector<2x16xf32>
    %631 = vector.extract_strided_slice %630 {offsets = [0, 0], sizes = [2, 12], strides = [1, 1]} : vector<2x16xf32> to vector<2x12xf32>
    %632 = arith.negf %631 : vector<2x12xf32>
    %633 = math.exp %632 : vector<2x12xf32>
    %cst_176 = arith.constant 1.000000e+00 : f32
    %634 = vector.broadcast %cst_176 : f32 to vector<2x12xf32>
    %635 = arith.addf %634, %633 : vector<2x12xf32>
    %636 = arith.divf %634, %635 : vector<2x12xf32>
    %637 = vector.extract_strided_slice %630 {offsets = [0, 12], sizes = [2, 4], strides = [1, 1]} : vector<2x16xf32> to vector<2x4xf32>
    %638 = math.tanh %637 : vector<2x4xf32>
    %639 = vector.extract_strided_slice %636 {offsets = [0, 0], sizes = [2, 4], strides = [1, 1]} : vector<2x12xf32> to vector<2x4xf32>
    %640 = vector.extract_strided_slice %636 {offsets = [0, 4], sizes = [2, 4], strides = [1, 1]} : vector<2x12xf32> to vector<2x4xf32>
    %641 = vector.extract_strided_slice %636 {offsets = [0, 8], sizes = [2, 4], strides = [1, 1]} : vector<2x12xf32> to vector<2x4xf32>
    %c0_177 = arith.constant 0 : index
    %c0_178 = arith.constant 0 : index
    %642 = vector.load %arg9[%c0_177, %c0_178] : memref<2x4xf32, #tpu.memory_space<vmem>>, vector<2x4xf32>
    %643 = arith.mulf %640, %642 : vector<2x4xf32>
    %644 = arith.mulf %639, %638 : vector<2x4xf32>
    %645 = arith.addf %643, %644 : vector<2x4xf32>
    %646 = math.tanh %645 : vector<2x4xf32>
    %647 = arith.mulf %641, %646 : vector<2x4xf32>
    %c0_179 = arith.constant 0 : index
    %c0_180 = arith.constant 0 : index
    %648 = vector.load %arg9[%c0_179, %c0_180] : memref<2x4xf32, #tpu.memory_space<vmem>>, vector<2x4xf32>
    tpu.vector_store %arg9[%c0_179, %c0_180], %645 {strides = array<i32>} : memref<2x4xf32, #tpu.memory_space<vmem>>, vector<2x4xf32>,
    %c0_181 = arith.constant 0 : index
    %c0_182 = arith.constant 0 : index
    %649 = vector.load %arg8[%c0_181, %c0_182] : memref<2x4xf32, #tpu.memory_space<vmem>>, vector<2x4xf32>
    tpu.vector_store %arg8[%c0_181, %c0_182], %647 {strides = array<i32>} : memref<2x4xf32, #tpu.memory_space<vmem>>, vector<2x4xf32>,
    %650 = arith.index_cast %c12_i32 : i32 to index
    %c0_183 = arith.constant 0 : index
    %c0_184 = arith.constant 0 : index
    %651 = vector.load %arg7[%650, %c0_183, %c0_184] : memref<16x2x4xf32, #tpu.memory_space<vmem>>, vector<1x2x4xf32>
    %652 = vector.shape_cast %651 : vector<1x2x4xf32> to vector<2x4xf32>
    %653 = vector.shape_cast %647 : vector<2x4xf32> to vector<1x2x4xf32>
    tpu.vector_store %arg7[%650, %c0_183, %c0_184], %653 {strides = array<i32>} : memref<16x2x4xf32, #tpu.memory_space<vmem>>, vector<1x2x4xf32>,
    %c13_i32 = arith.constant 13 : i32
    %654 = arith.index_cast %c13_i32 : i32 to index
    %c0_185 = arith.constant 0 : index
    %c0_186 = arith.constant 0 : index
    %655 = vector.load %arg6[%654, %c0_185, %c0_186] : memref<16x2x16xf32, #tpu.memory_space<vmem>>, vector<1x2x16xf32>
    %656 = vector.shape_cast %655 : vector<1x2x16xf32> to vector<2x16xf32>
    %c0_187 = arith.constant 0 : index
    %c0_188 = arith.constant 0 : index
    %657 = vector.load %arg8[%c0_187, %c0_188] : memref<2x4xf32, #tpu.memory_space<vmem>>, vector<2x4xf32>
    %658 = vector.extract_strided_slice %657 {offsets = [0, 0], sizes = [2, 1], strides = [1, 1]} : vector<2x4xf32> to vector<2x1xf32>
    %659 = vector.broadcast %658 : vector<2x1xf32> to vector<2x16xf32>
    %660 = vector.broadcast %35 : vector<1x16xf32> to vector<2x16xf32>
    %661 = arith.mulf %659, %660 : vector<2x16xf32>
    %662 = vector.extract_strided_slice %657 {offsets = [0, 1], sizes = [2, 1], strides = [1, 1]} : vector<2x4xf32> to vector<2x1xf32>
    %663 = vector.broadcast %662 : vector<2x1xf32> to vector<2x16xf32>
    %664 = vector.broadcast %36 : vector<1x16xf32> to vector<2x16xf32>
    %665 = arith.mulf %663, %664 : vector<2x16xf32>
    %666 = arith.addf %661, %665 : vector<2x16xf32>
    %667 = vector.extract_strided_slice %657 {offsets = [0, 2], sizes = [2, 1], strides = [1, 1]} : vector<2x4xf32> to vector<2x1xf32>
    %668 = vector.broadcast %667 : vector<2x1xf32> to vector<2x16xf32>
    %669 = vector.broadcast %37 : vector<1x16xf32> to vector<2x16xf32>
    %670 = arith.mulf %668, %669 : vector<2x16xf32>
    %671 = arith.addf %666, %670 : vector<2x16xf32>
    %672 = vector.extract_strided_slice %657 {offsets = [0, 3], sizes = [2, 1], strides = [1, 1]} : vector<2x4xf32> to vector<2x1xf32>
    %673 = vector.broadcast %672 : vector<2x1xf32> to vector<2x16xf32>
    %674 = vector.broadcast %38 : vector<1x16xf32> to vector<2x16xf32>
    %675 = arith.mulf %673, %674 : vector<2x16xf32>
    %676 = arith.addf %671, %675 : vector<2x16xf32>
    %677 = arith.addf %656, %676 : vector<2x16xf32>
    %678 = vector.extract_strided_slice %677 {offsets = [0, 0], sizes = [2, 12], strides = [1, 1]} : vector<2x16xf32> to vector<2x12xf32>
    %679 = arith.negf %678 : vector<2x12xf32>
    %680 = math.exp %679 : vector<2x12xf32>
    %cst_189 = arith.constant 1.000000e+00 : f32
    %681 = vector.broadcast %cst_189 : f32 to vector<2x12xf32>
    %682 = arith.addf %681, %680 : vector<2x12xf32>
    %683 = arith.divf %681, %682 : vector<2x12xf32>
    %684 = vector.extract_strided_slice %677 {offsets = [0, 12], sizes = [2, 4], strides = [1, 1]} : vector<2x16xf32> to vector<2x4xf32>
    %685 = math.tanh %684 : vector<2x4xf32>
    %686 = vector.extract_strided_slice %683 {offsets = [0, 0], sizes = [2, 4], strides = [1, 1]} : vector<2x12xf32> to vector<2x4xf32>
    %687 = vector.extract_strided_slice %683 {offsets = [0, 4], sizes = [2, 4], strides = [1, 1]} : vector<2x12xf32> to vector<2x4xf32>
    %688 = vector.extract_strided_slice %683 {offsets = [0, 8], sizes = [2, 4], strides = [1, 1]} : vector<2x12xf32> to vector<2x4xf32>
    %c0_190 = arith.constant 0 : index
    %c0_191 = arith.constant 0 : index
    %689 = vector.load %arg9[%c0_190, %c0_191] : memref<2x4xf32, #tpu.memory_space<vmem>>, vector<2x4xf32>
    %690 = arith.mulf %687, %689 : vector<2x4xf32>
    %691 = arith.mulf %686, %685 : vector<2x4xf32>
    %692 = arith.addf %690, %691 : vector<2x4xf32>
    %693 = math.tanh %692 : vector<2x4xf32>
    %694 = arith.mulf %688, %693 : vector<2x4xf32>
    %c0_192 = arith.constant 0 : index
    %c0_193 = arith.constant 0 : index
    %695 = vector.load %arg9[%c0_192, %c0_193] : memref<2x4xf32, #tpu.memory_space<vmem>>, vector<2x4xf32>
    tpu.vector_store %arg9[%c0_192, %c0_193], %692 {strides = array<i32>} : memref<2x4xf32, #tpu.memory_space<vmem>>, vector<2x4xf32>,
    %c0_194 = arith.constant 0 : index
    %c0_195 = arith.constant 0 : index
    %696 = vector.load %arg8[%c0_194, %c0_195] : memref<2x4xf32, #tpu.memory_space<vmem>>, vector<2x4xf32>
    tpu.vector_store %arg8[%c0_194, %c0_195], %694 {strides = array<i32>} : memref<2x4xf32, #tpu.memory_space<vmem>>, vector<2x4xf32>,
    %697 = arith.index_cast %c13_i32 : i32 to index
    %c0_196 = arith.constant 0 : index
    %c0_197 = arith.constant 0 : index
    %698 = vector.load %arg7[%697, %c0_196, %c0_197] : memref<16x2x4xf32, #tpu.memory_space<vmem>>, vector<1x2x4xf32>
    %699 = vector.shape_cast %698 : vector<1x2x4xf32> to vector<2x4xf32>
    %700 = vector.shape_cast %694 : vector<2x4xf32> to vector<1x2x4xf32>
    tpu.vector_store %arg7[%697, %c0_196, %c0_197], %700 {strides = array<i32>} : memref<16x2x4xf32, #tpu.memory_space<vmem>>, vector<1x2x4xf32>,
    %c14_i32 = arith.constant 14 : i32
    %701 = arith.index_cast %c14_i32 : i32 to index
    %c0_198 = arith.constant 0 : index
    %c0_199 = arith.constant 0 : index
    %702 = vector.load %arg6[%701, %c0_198, %c0_199] : memref<16x2x16xf32, #tpu.memory_space<vmem>>, vector<1x2x16xf32>
    %703 = vector.shape_cast %702 : vector<1x2x16xf32> to vector<2x16xf32>
    %c0_200 = arith.constant 0 : index
    %c0_201 = arith.constant 0 : index
    %704 = vector.load %arg8[%c0_200, %c0_201] : memref<2x4xf32, #tpu.memory_space<vmem>>, vector<2x4xf32>
    %705 = vector.extract_strided_slice %704 {offsets = [0, 0], sizes = [2, 1], strides = [1, 1]} : vector<2x4xf32> to vector<2x1xf32>
    %706 = vector.broadcast %705 : vector<2x1xf32> to vector<2x16xf32>
    %707 = vector.broadcast %35 : vector<1x16xf32> to vector<2x16xf32>
    %708 = arith.mulf %706, %707 : vector<2x16xf32>
    %709 = vector.extract_strided_slice %704 {offsets = [0, 1], sizes = [2, 1], strides = [1, 1]} : vector<2x4xf32> to vector<2x1xf32>
    %710 = vector.broadcast %709 : vector<2x1xf32> to vector<2x16xf32>
    %711 = vector.broadcast %36 : vector<1x16xf32> to vector<2x16xf32>
    %712 = arith.mulf %710, %711 : vector<2x16xf32>
    %713 = arith.addf %708, %712 : vector<2x16xf32>
    %714 = vector.extract_strided_slice %704 {offsets = [0, 2], sizes = [2, 1], strides = [1, 1]} : vector<2x4xf32> to vector<2x1xf32>
    %715 = vector.broadcast %714 : vector<2x1xf32> to vector<2x16xf32>
    %716 = vector.broadcast %37 : vector<1x16xf32> to vector<2x16xf32>
    %717 = arith.mulf %715, %716 : vector<2x16xf32>
    %718 = arith.addf %713, %717 : vector<2x16xf32>
    %719 = vector.extract_strided_slice %704 {offsets = [0, 3], sizes = [2, 1], strides = [1, 1]} : vector<2x4xf32> to vector<2x1xf32>
    %720 = vector.broadcast %719 : vector<2x1xf32> to vector<2x16xf32>
    %721 = vector.broadcast %38 : vector<1x16xf32> to vector<2x16xf32>
    %722 = arith.mulf %720, %721 : vector<2x16xf32>
    %723 = arith.addf %718, %722 : vector<2x16xf32>
    %724 = arith.addf %703, %723 : vector<2x16xf32>
    %725 = vector.extract_strided_slice %724 {offsets = [0, 0], sizes = [2, 12], strides = [1, 1]} : vector<2x16xf32> to vector<2x12xf32>
    %726 = arith.negf %725 : vector<2x12xf32>
    %727 = math.exp %726 : vector<2x12xf32>
    %cst_202 = arith.constant 1.000000e+00 : f32
    %728 = vector.broadcast %cst_202 : f32 to vector<2x12xf32>
    %729 = arith.addf %728, %727 : vector<2x12xf32>
    %730 = arith.divf %728, %729 : vector<2x12xf32>
    %731 = vector.extract_strided_slice %724 {offsets = [0, 12], sizes = [2, 4], strides = [1, 1]} : vector<2x16xf32> to vector<2x4xf32>
    %732 = math.tanh %731 : vector<2x4xf32>
    %733 = vector.extract_strided_slice %730 {offsets = [0, 0], sizes = [2, 4], strides = [1, 1]} : vector<2x12xf32> to vector<2x4xf32>
    %734 = vector.extract_strided_slice %730 {offsets = [0, 4], sizes = [2, 4], strides = [1, 1]} : vector<2x12xf32> to vector<2x4xf32>
    %735 = vector.extract_strided_slice %730 {offsets = [0, 8], sizes = [2, 4], strides = [1, 1]} : vector<2x12xf32> to vector<2x4xf32>
    %c0_203 = arith.constant 0 : index
    %c0_204 = arith.constant 0 : index
    %736 = vector.load %arg9[%c0_203, %c0_204] : memref<2x4xf32, #tpu.memory_space<vmem>>, vector<2x4xf32>
    %737 = arith.mulf %734, %736 : vector<2x4xf32>
    %738 = arith.mulf %733, %732 : vector<2x4xf32>
    %739 = arith.addf %737, %738 : vector<2x4xf32>
    %740 = math.tanh %739 : vector<2x4xf32>
    %741 = arith.mulf %735, %740 : vector<2x4xf32>
    %c0_205 = arith.constant 0 : index
    %c0_206 = arith.constant 0 : index
    %742 = vector.load %arg9[%c0_205, %c0_206] : memref<2x4xf32, #tpu.memory_space<vmem>>, vector<2x4xf32>
    tpu.vector_store %arg9[%c0_205, %c0_206], %739 {strides = array<i32>} : memref<2x4xf32, #tpu.memory_space<vmem>>, vector<2x4xf32>,
    %c0_207 = arith.constant 0 : index
    %c0_208 = arith.constant 0 : index
    %743 = vector.load %arg8[%c0_207, %c0_208] : memref<2x4xf32, #tpu.memory_space<vmem>>, vector<2x4xf32>
    tpu.vector_store %arg8[%c0_207, %c0_208], %741 {strides = array<i32>} : memref<2x4xf32, #tpu.memory_space<vmem>>, vector<2x4xf32>,
    %744 = arith.index_cast %c14_i32 : i32 to index
    %c0_209 = arith.constant 0 : index
    %c0_210 = arith.constant 0 : index
    %745 = vector.load %arg7[%744, %c0_209, %c0_210] : memref<16x2x4xf32, #tpu.memory_space<vmem>>, vector<1x2x4xf32>
    %746 = vector.shape_cast %745 : vector<1x2x4xf32> to vector<2x4xf32>
    %747 = vector.shape_cast %741 : vector<2x4xf32> to vector<1x2x4xf32>
    tpu.vector_store %arg7[%744, %c0_209, %c0_210], %747 {strides = array<i32>} : memref<16x2x4xf32, #tpu.memory_space<vmem>>, vector<1x2x4xf32>,
    %c15_i32 = arith.constant 15 : i32
    %748 = arith.index_cast %c15_i32 : i32 to index
    %c0_211 = arith.constant 0 : index
    %c0_212 = arith.constant 0 : index
    %749 = vector.load %arg6[%748, %c0_211, %c0_212] : memref<16x2x16xf32, #tpu.memory_space<vmem>>, vector<1x2x16xf32>
    %750 = vector.shape_cast %749 : vector<1x2x16xf32> to vector<2x16xf32>
    %c0_213 = arith.constant 0 : index
    %c0_214 = arith.constant 0 : index
    %751 = vector.load %arg8[%c0_213, %c0_214] : memref<2x4xf32, #tpu.memory_space<vmem>>, vector<2x4xf32>
    %752 = vector.extract_strided_slice %751 {offsets = [0, 0], sizes = [2, 1], strides = [1, 1]} : vector<2x4xf32> to vector<2x1xf32>
    %753 = vector.broadcast %752 : vector<2x1xf32> to vector<2x16xf32>
    %754 = vector.broadcast %35 : vector<1x16xf32> to vector<2x16xf32>
    %755 = arith.mulf %753, %754 : vector<2x16xf32>
    %756 = vector.extract_strided_slice %751 {offsets = [0, 1], sizes = [2, 1], strides = [1, 1]} : vector<2x4xf32> to vector<2x1xf32>
    %757 = vector.broadcast %756 : vector<2x1xf32> to vector<2x16xf32>
    %758 = vector.broadcast %36 : vector<1x16xf32> to vector<2x16xf32>
    %759 = arith.mulf %757, %758 : vector<2x16xf32>
    %760 = arith.addf %755, %759 : vector<2x16xf32>
    %761 = vector.extract_strided_slice %751 {offsets = [0, 2], sizes = [2, 1], strides = [1, 1]} : vector<2x4xf32> to vector<2x1xf32>
    %762 = vector.broadcast %761 : vector<2x1xf32> to vector<2x16xf32>
    %763 = vector.broadcast %37 : vector<1x16xf32> to vector<2x16xf32>
    %764 = arith.mulf %762, %763 : vector<2x16xf32>
    %765 = arith.addf %760, %764 : vector<2x16xf32>
    %766 = vector.extract_strided_slice %751 {offsets = [0, 3], sizes = [2, 1], strides = [1, 1]} : vector<2x4xf32> to vector<2x1xf32>
    %767 = vector.broadcast %766 : vector<2x1xf32> to vector<2x16xf32>
    %768 = vector.broadcast %38 : vector<1x16xf32> to vector<2x16xf32>
    %769 = arith.mulf %767, %768 : vector<2x16xf32>
    %770 = arith.addf %765, %769 : vector<2x16xf32>
    %771 = arith.addf %750, %770 : vector<2x16xf32>
    %772 = vector.extract_strided_slice %771 {offsets = [0, 0], sizes = [2, 12], strides = [1, 1]} : vector<2x16xf32> to vector<2x12xf32>
    %773 = arith.negf %772 : vector<2x12xf32>
    %774 = math.exp %773 : vector<2x12xf32>
    %cst_215 = arith.constant 1.000000e+00 : f32
    %775 = vector.broadcast %cst_215 : f32 to vector<2x12xf32>
    %776 = arith.addf %775, %774 : vector<2x12xf32>
    %777 = arith.divf %775, %776 : vector<2x12xf32>
    %778 = vector.extract_strided_slice %771 {offsets = [0, 12], sizes = [2, 4], strides = [1, 1]} : vector<2x16xf32> to vector<2x4xf32>
    %779 = math.tanh %778 : vector<2x4xf32>
    %780 = vector.extract_strided_slice %777 {offsets = [0, 0], sizes = [2, 4], strides = [1, 1]} : vector<2x12xf32> to vector<2x4xf32>
    %781 = vector.extract_strided_slice %777 {offsets = [0, 4], sizes = [2, 4], strides = [1, 1]} : vector<2x12xf32> to vector<2x4xf32>
    %782 = vector.extract_strided_slice %777 {offsets = [0, 8], sizes = [2, 4], strides = [1, 1]} : vector<2x12xf32> to vector<2x4xf32>
    %c0_216 = arith.constant 0 : index
    %c0_217 = arith.constant 0 : index
    %783 = vector.load %arg9[%c0_216, %c0_217] : memref<2x4xf32, #tpu.memory_space<vmem>>, vector<2x4xf32>
    %784 = arith.mulf %781, %783 : vector<2x4xf32>
    %785 = arith.mulf %780, %779 : vector<2x4xf32>
    %786 = arith.addf %784, %785 : vector<2x4xf32>
    %787 = math.tanh %786 : vector<2x4xf32>
    %788 = arith.mulf %782, %787 : vector<2x4xf32>
    %c0_218 = arith.constant 0 : index
    %c0_219 = arith.constant 0 : index
    %789 = vector.load %arg9[%c0_218, %c0_219] : memref<2x4xf32, #tpu.memory_space<vmem>>, vector<2x4xf32>
    tpu.vector_store %arg9[%c0_218, %c0_219], %786 {strides = array<i32>} : memref<2x4xf32, #tpu.memory_space<vmem>>, vector<2x4xf32>,
    %c0_220 = arith.constant 0 : index
    %c0_221 = arith.constant 0 : index
    %790 = vector.load %arg8[%c0_220, %c0_221] : memref<2x4xf32, #tpu.memory_space<vmem>>, vector<2x4xf32>
    tpu.vector_store %arg8[%c0_220, %c0_221], %788 {strides = array<i32>} : memref<2x4xf32, #tpu.memory_space<vmem>>, vector<2x4xf32>,
    %791 = arith.index_cast %c15_i32 : i32 to index
    %c0_222 = arith.constant 0 : index
    %c0_223 = arith.constant 0 : index
    %792 = vector.load %arg7[%791, %c0_222, %c0_223] : memref<16x2x4xf32, #tpu.memory_space<vmem>>, vector<1x2x4xf32>
    %793 = vector.shape_cast %792 : vector<1x2x4xf32> to vector<2x4xf32>
    %794 = vector.shape_cast %788 : vector<2x4xf32> to vector<1x2x4xf32>
    tpu.vector_store %arg7[%791, %c0_222, %c0_223], %794 {strides = array<i32>} : memref<16x2x4xf32, #tpu.memory_space<vmem>>, vector<1x2x4xf32>,
    %c16_i32 = arith.constant 16 : i32
    %c0_224 = arith.constant 0 : index
    %c0_225 = arith.constant 0 : index
    %c0_226 = arith.constant 0 : index
    %795 = vector.load %arg7[%c0_224, %c0_225, %c0_226] : memref<16x2x4xf32, #tpu.memory_space<vmem>>, vector<16x2x4xf32>
    %c0_227 = arith.constant 0 : index
    %c0_228 = arith.constant 0 : index
    %c0_229 = arith.constant 0 : index
    %796 = vector.load %arg5[%c0_227, %c0_228, %c0_229] : memref<16x2x4xf32, #tpu.memory_space<vmem>>, vector<16x2x4xf32>
    tpu.vector_store %arg5[%c0_227, %c0_228, %c0_229], %795 {strides = array<i32>} : memref<16x2x4xf32, #tpu.memory_space<vmem>>, vector<16x2x4xf32>,
    return
  }
  func.func @transform_0(%arg0: i32) -> (i32, i32, i32) {
    %c0_i32 = arith.constant 0 : i32
    %c0_i32_0 = arith.constant 0 : i32
    %c0_i32_1 = arith.constant 0 : i32
    return %c0_i32, %arg0, %c0_i32_0 : i32, i32, i32
  }
  func.func @transform_1(%arg0: i32) -> (i32, i32) {
    %c0_i32 = arith.constant 0 : i32
    %c0_i32_0 = arith.constant 0 : i32
    %c0_i32_1 = arith.constant 0 : i32
    return %c0_i32, %c0_i32_0 : i32, i32
  }
  func.func @transform_2(%arg0: i32) -> (i32, i32) {
    %c0_i32 = arith.constant 0 : i32
    %c0_i32_0 = arith.constant 0 : i32
    %c0_i32_1 = arith.constant 0 : i32
    return %c0_i32, %c0_i32_0 : i32, i32
  }
  func.func @transform_3(%arg0: i32) -> (i32, i32) {
    %c0_i32 = arith.constant 0 : i32
    %c0_i32_0 = arith.constant 0 : i32
    %c0_i32_1 = arith.constant 0 : i32
    return %c0_i32, %c0_i32_0 : i32, i32
  }
  func.func @transform_4(%arg0: i32) -> (i32, i32, i32) {
    %c0_i32 = arith.constant 0 : i32
    %c0_i32_0 = arith.constant 0 : i32
    %c0_i32_1 = arith.constant 0 : i32
    return %c0_i32, %arg0, %c0_i32_0 : i32, i32, i32
  }
}

</mosaic_0001>

<llo_original>
// kernel: tpu_custom_call.1
$region0: #{tpu_custom_call.1}
  #allocation0 [shape = 'u32[]', space=smem, size = 0x4, offset = 0x4, fixed_abs, tag = 'smem constant byte address 0x4 - core index']
  #allocation1 [shape = 'u32[144,128]{1,0:T(1,128)}', space=vmem, size = 0x12000, scoped, tag = 'internal scratch']
  #allocation2 [shape = 'f32[16,2,16]{2,1,0:T(2,128)}', space=vmem, size = 0x4000, scoped, tag = 'scratch operand']
  #allocation3 [shape = 'f32[16,2,4]{2,1,0:T(2,128)}', space=vmem, size = 0x4000, scoped, tag = 'scratch operand']
  #allocation4 [shape = 'f32[2,4]{1,0:T(2,128)}', space=vmem, size = 0x400, scoped, tag = 'scratch operand']
  #allocation5 [shape = 'f32[2,4]{1,0:T(2,128)}', space=vmem, size = 0x400, scoped, tag = 'scratch operand']
  %s0 = inlined_call_operand.vmem [shape: f32[16,2,4], index: 0, kind: input, shape index: {}]
  %s1 = inlined_call_operand.vmem [shape: f32[4,16], index: 1, kind: input, shape index: {}]
  %s2 = inlined_call_operand.vmem [shape: f32[4,16], index: 2, kind: input, shape index: {}]
  %s3 = inlined_call_operand.vmem [shape: f32[1,16], index: 3, kind: input, shape index: {}]
  %s4 = inlined_call_operand.vmem [shape: f32[16,2,4], index: 4, kind: output, shape index: {}]
  %s5 = sld [smem:[#allocation0]]
  $region26: #{tpu_custom_call.1} parent=0
    _
  %s7 = ssub.s32 1, %s5
  %s8 = scalar_select 0, %s7, %s5
  // Predicated region
  $region2: #{tpu_custom_call.1} parent=0 // pred_check
    _
  $region3: #{tpu_custom_call.1} parent=0 // pred_check_branch
    %10 = sbr.rel (0) target = $region5
  $region4: #{tpu_custom_call.1} parent=0 // pred_region
    _
  $region5: #{tpu_custom_call.1} parent=0 // pred_fallthru
    _
  // Predicated region
  $region6: #{tpu_custom_call.1} parent=0 // pred_check
    _
  $region7: #{tpu_custom_call.1} parent=0 // pred_check_branch
    %12 = sbr.rel (0) target = $region9
  $region8: #{tpu_custom_call.1} parent=0 // pred_region
    _
  $region9: #{tpu_custom_call.1} parent=0 // pred_fallthru
    _
  // Predicated region
  $region10: #{tpu_custom_call.1} parent=0 // pred_check
    _
  $region11: #{tpu_custom_call.1} parent=0 // pred_check_branch
    %14 = sbr.rel (0) target = $region13
  $region12: #{tpu_custom_call.1} parent=0 // pred_region
    _
  $region13: #{tpu_custom_call.1} parent=0 // pred_fallthru
    _
  // Predicated region
  $region14: #{tpu_custom_call.1} parent=0 // pred_check
    _
  $region15: #{tpu_custom_call.1} parent=0 // pred_check_branch
    %16 = sbr.rel (0) target = $region17
  $region16: #{tpu_custom_call.1} parent=0 // pred_region
    _
  $region17: #{tpu_custom_call.1} parent=0 // pred_fallthru
    _
  %v17 = vld [vmem:[%s0] sm:$0x3]
  %v18 = vld [vmem:[%s0 + $0x2] sm:$0x3]
  %v19 = vld [vmem:[%s0 + $0x4] sm:$0x3]
  %v20 = vld [vmem:[%s0 + $0x6] sm:$0x3]
  %v21 = vld [vmem:[%s0 + $0x8] sm:$0x3]
  %v22 = vld [vmem:[%s0 + $0xa] sm:$0x3]
  %v23 = vld [vmem:[%s0 + $0xc] sm:$0x3]
  %v24 = vld [vmem:[%s0 + $0xe] sm:$0x3]
  %v25 = vld [vmem:[%s0 + $0x10] sm:$0x3]
  %v26 = vld [vmem:[%s0 + $0x12] sm:$0x3]
  %v27 = vld [vmem:[%s0 + $0x14] sm:$0x3]
  %v28 = vld [vmem:[%s0 + $0x16] sm:$0x3]
  %v29 = vld [vmem:[%s0 + $0x18] sm:$0x3]
  %v30 = vld [vmem:[%s0 + $0x1a] sm:$0x3]
  %v31 = vld [vmem:[%s0 + $0x1c] sm:$0x3]
  %v32 = vld [vmem:[%s0 + $0x1e] sm:$0x3]
  %v33 = vld [vmem:[%s1] sm:$0xf]
  %v34 = vld [vmem:[%s2] sm:$0xf]
  %v35 = vld [vmem:[%s3] sm:$0x1]
  %37 = vset.pattern.permute.xlu0 0
  %38 = vperm.xlu0 %37, %v17
  %v39 = vpop.permute.xlu0 %38
  %42 = vset.pattern.permute.xlu0 0
  %43 = vperm.xlu0 %42, %v18
  %v44 = vpop.permute.xlu0 %43
  %47 = vset.pattern.permute.xlu0 0
  %48 = vperm.xlu0 %47, %v19
  %v49 = vpop.permute.xlu0 %48
  %52 = vset.pattern.permute.xlu0 0
  %53 = vperm.xlu0 %52, %v20
  %v54 = vpop.permute.xlu0 %53
  %57 = vset.pattern.permute.xlu0 0
  %58 = vperm.xlu0 %57, %v21
  %v59 = vpop.permute.xlu0 %58
  %62 = vset.pattern.permute.xlu0 0
  %63 = vperm.xlu0 %62, %v22
  %v64 = vpop.permute.xlu0 %63
  %67 = vset.pattern.permute.xlu0 0
  %68 = vperm.xlu0 %67, %v23
  %v69 = vpop.permute.xlu0 %68
  %72 = vset.pattern.permute.xlu0 0
  %73 = vperm.xlu0 %72, %v24
  %v74 = vpop.permute.xlu0 %73
  %77 = vset.pattern.permute.xlu0 0
  %78 = vperm.xlu0 %77, %v25
  %v79 = vpop.permute.xlu0 %78
  %82 = vset.pattern.permute.xlu0 0
  %83 = vperm.xlu0 %82, %v26
  %v84 = vpop.permute.xlu0 %83
  %87 = vset.pattern.permute.xlu0 0
  %88 = vperm.xlu0 %87, %v27
  %v89 = vpop.permute.xlu0 %88
  %92 = vset.pattern.permute.xlu0 0
  %93 = vperm.xlu0 %92, %v28
  %v94 = vpop.permute.xlu0 %93
  %97 = vset.pattern.permute.xlu0 0
  %98 = vperm.xlu0 %97, %v29
  %v99 = vpop.permute.xlu0 %98
  %102 = vset.pattern.permute.xlu0 0
  %103 = vperm.xlu0 %102, %v30
  %v104 = vpop.permute.xlu0 %103
  %107 = vset.pattern.permute.xlu0 0
  %108 = vperm.xlu0 %107, %v31
  %v109 = vpop.permute.xlu0 %108
  %112 = vset.pattern.permute.xlu0 0
  %113 = vperm.xlu0 %112, %v32
  %v114 = vpop.permute.xlu0 %113
  %v116 = vlaneseq
  %v117 = vshrl.u32 %v116, 7
  %v118 = vsub.s32 0, %v117
  %v119 = vrot.slane %v33, %v118
  %v120 = vmul.f32 %v39, %v119
  %v121 = vmul.f32 %v44, %v119
  %v122 = vmul.f32 %v49, %v119
  %v123 = vmul.f32 %v54, %v119
  %v124 = vmul.f32 %v59, %v119
  %v125 = vmul.f32 %v64, %v119
  %v126 = vmul.f32 %v69, %v119
  %v127 = vmul.f32 %v74, %v119
  %v128 = vmul.f32 %v79, %v119
  %v129 = vmul.f32 %v84, %v119
  %v130 = vmul.f32 %v89, %v119
  %v131 = vmul.f32 %v94, %v119
  %v132 = vmul.f32 %v99, %v119
  %v133 = vmul.f32 %v104, %v119
  %v134 = vmul.f32 %v109, %v119
  %v135 = vmul.f32 %v114, %v119
  %136 = vset.pattern.permute.xlu0 1
  %137 = vperm.xlu0 %136, %v17
  %v138 = vpop.permute.xlu0 %137
  %140 = vset.pattern.permute.xlu0 1
  %141 = vperm.xlu0 %140, %v18
  %v142 = vpop.permute.xlu0 %141
  %144 = vset.pattern.permute.xlu0 1
  %145 = vperm.xlu0 %144, %v19
  %v146 = vpop.permute.xlu0 %145
  %148 = vset.pattern.permute.xlu0 1
  %149 = vperm.xlu0 %148, %v20
  %v150 = vpop.permute.xlu0 %149
  %152 = vset.pattern.permute.xlu0 1
  %153 = vperm.xlu0 %152, %v21
  %v154 = vpop.permute.xlu0 %153
  %156 = vset.pattern.permute.xlu0 1
  %157 = vperm.xlu0 %156, %v22
  %v158 = vpop.permute.xlu0 %157
  %160 = vset.pattern.permute.xlu0 1
  %161 = vperm.xlu0 %160, %v23
  %v162 = vpop.permute.xlu0 %161
  %164 = vset.pattern.permute.xlu0 1
  %165 = vperm.xlu0 %164, %v24
  %v166 = vpop.permute.xlu0 %165
  %168 = vset.pattern.permute.xlu0 1
  %169 = vperm.xlu0 %168, %v25
  %v170 = vpop.permute.xlu0 %169
  %172 = vset.pattern.permute.xlu0 1
  %173 = vperm.xlu0 %172, %v26
  %v174 = vpop.permute.xlu0 %173
  %176 = vset.pattern.permute.xlu0 1
  %177 = vperm.xlu0 %176, %v27
  %v178 = vpop.permute.xlu0 %177
  %180 = vset.pattern.permute.xlu0 1
  %181 = vperm.xlu0 %180, %v28
  %v182 = vpop.permute.xlu0 %181
  %184 = vset.pattern.permute.xlu0 1
  %185 = vperm.xlu0 %184, %v29
  %v186 = vpop.permute.xlu0 %185
  %188 = vset.pattern.permute.xlu0 1
  %189 = vperm.xlu0 %188, %v30
  %v190 = vpop.permute.xlu0 %189
  %192 = vset.pattern.permute.xlu0 1
  %193 = vperm.xlu0 %192, %v31
  %v194 = vpop.permute.xlu0 %193
  %196 = vset.pattern.permute.xlu0 1
  %197 = vperm.xlu0 %196, %v32
  %v198 = vpop.permute.xlu0 %197
  %v200 = vlaneseq
  %v201 = vshrl.u32 %v200, 7
  %v202 = vsub.s32 1, %v201
  %v203 = vrot.slane %v33, %v202
  %v204 = vmul.f32 %v138, %v203
  %v205 = vmul.f32 %v142, %v203
  %v206 = vmul.f32 %v146, %v203
  %v207 = vmul.f32 %v150, %v203
  %v208 = vmul.f32 %v154, %v203
  %v209 = vmul.f32 %v158, %v203
  %v210 = vmul.f32 %v162, %v203
  %v211 = vmul.f32 %v166, %v203
  %v212 = vmul.f32 %v170, %v203
  %v213 = vmul.f32 %v174, %v203
  %v214 = vmul.f32 %v178, %v203
  %v215 = vmul.f32 %v182, %v203
  %v216 = vmul.f32 %v186, %v203
  %v217 = vmul.f32 %v190, %v203
  %v218 = vmul.f32 %v194, %v203
  %v219 = vmul.f32 %v198, %v203
  %v220 = vadd.f32 %v120, %v204
  %v221 = vadd.f32 %v121, %v205
  %v222 = vadd.f32 %v122, %v206
  %v223 = vadd.f32 %v123, %v207
  %v224 = vadd.f32 %v124, %v208
  %v225 = vadd.f32 %v125, %v209
  %v226 = vadd.f32 %v126, %v210
  %v227 = vadd.f32 %v127, %v211
  %v228 = vadd.f32 %v128, %v212
  %v229 = vadd.f32 %v129, %v213
  %v230 = vadd.f32 %v130, %v214
  %v231 = vadd.f32 %v131, %v215
  %v232 = vadd.f32 %v132, %v216
  %v233 = vadd.f32 %v133, %v217
  %v234 = vadd.f32 %v134, %v218
  %v235 = vadd.f32 %v135, %v219
  %236 = vset.pattern.permute.xlu0 2
  %237 = vperm.xlu0 %236, %v17
  %v238 = vpop.permute.xlu0 %237
  %240 = vset.pattern.permute.xlu0 2
  %241 = vperm.xlu0 %240, %v18
  %v242 = vpop.permute.xlu0 %241
  %244 = vset.pattern.permute.xlu0 2
  %245 = vperm.xlu0 %244, %v19
  %v246 = vpop.permute.xlu0 %245
  %248 = vset.pattern.permute.xlu0 2
  %249 = vperm.xlu0 %248, %v20
  %v250 = vpop.permute.xlu0 %249
  %252 = vset.pattern.permute.xlu0 2
  %253 = vperm.xlu0 %252, %v21
  %v254 = vpop.permute.xlu0 %253
  %256 = vset.pattern.permute.xlu0 2
  %257 = vperm.xlu0 %256, %v22
  %v258 = vpop.permute.xlu0 %257
  %260 = vset.pattern.permute.xlu0 2
  %261 = vperm.xlu0 %260, %v23
  %v262 = vpop.permute.xlu0 %261
  %264 = vset.pattern.permute.xlu0 2
  %265 = vperm.xlu0 %264, %v24
  %v266 = vpop.permute.xlu0 %265
  %268 = vset.pattern.permute.xlu0 2
  %269 = vperm.xlu0 %268, %v25
  %v270 = vpop.permute.xlu0 %269
  %272 = vset.pattern.permute.xlu0 2
  %273 = vperm.xlu0 %272, %v26
  %v274 = vpop.permute.xlu0 %273
  %276 = vset.pattern.permute.xlu0 2
  %277 = vperm.xlu0 %276, %v27
  %v278 = vpop.permute.xlu0 %277
  %280 = vset.pattern.permute.xlu0 2
  %281 = vperm.xlu0 %280, %v28
  %v282 = vpop.permute.xlu0 %281
  %284 = vset.pattern.permute.xlu0 2
  %285 = vperm.xlu0 %284, %v29
  %v286 = vpop.permute.xlu0 %285
  %288 = vset.pattern.permute.xlu0 2
  %289 = vperm.xlu0 %288, %v30
  %v290 = vpop.permute.xlu0 %289
  %292 = vset.pattern.permute.xlu0 2
  %293 = vperm.xlu0 %292, %v31
  %v294 = vpop.permute.xlu0 %293
  %296 = vset.pattern.permute.xlu0 2
  %297 = vperm.xlu0 %296, %v32
  %v298 = vpop.permute.xlu0 %297
  %v300 = vlaneseq
  %v301 = vshrl.u32 %v300, 7
  %v302 = vsub.s32 2, %v301
  %v303 = vrot.slane %v33, %v302
  %v304 = vmul.f32 %v238, %v303
  %v305 = vmul.f32 %v242, %v303
  %v306 = vmul.f32 %v246, %v303
  %v307 = vmul.f32 %v250, %v303
  %v308 = vmul.f32 %v254, %v303
  %v309 = vmul.f32 %v258, %v303
  %v310 = vmul.f32 %v262, %v303
  %v311 = vmul.f32 %v266, %v303
  %v312 = vmul.f32 %v270, %v303
  %v313 = vmul.f32 %v274, %v303
  %v314 = vmul.f32 %v278, %v303
  %v315 = vmul.f32 %v282, %v303
  %v316 = vmul.f32 %v286, %v303
  %v317 = vmul.f32 %v290, %v303
  %v318 = vmul.f32 %v294, %v303
  %v319 = vmul.f32 %v298, %v303
  %v320 = vadd.f32 %v220, %v304
  %v321 = vadd.f32 %v221, %v305
  %v322 = vadd.f32 %v222, %v306
  %v323 = vadd.f32 %v223, %v307
  %v324 = vadd.f32 %v224, %v308
  %v325 = vadd.f32 %v225, %v309
  %v326 = vadd.f32 %v226, %v310
  %v327 = vadd.f32 %v227, %v311
  %v328 = vadd.f32 %v228, %v312
  %v329 = vadd.f32 %v229, %v313
  %v330 = vadd.f32 %v230, %v314
  %v331 = vadd.f32 %v231, %v315
  %v332 = vadd.f32 %v232, %v316
  %v333 = vadd.f32 %v233, %v317
  %v334 = vadd.f32 %v234, %v318
  %v335 = vadd.f32 %v235, %v319
  %336 = vset.pattern.permute.xlu0 3
  %337 = vperm.xlu0 %336, %v17
  %v338 = vpop.permute.xlu0 %337
  %340 = vset.pattern.permute.xlu0 3
  %341 = vperm.xlu0 %340, %v18
  %v342 = vpop.permute.xlu0 %341
  %344 = vset.pattern.permute.xlu0 3
  %345 = vperm.xlu0 %344, %v19
  %v346 = vpop.permute.xlu0 %345
  %348 = vset.pattern.permute.xlu0 3
  %349 = vperm.xlu0 %348, %v20
  %v350 = vpop.permute.xlu0 %349
  %352 = vset.pattern.permute.xlu0 3
  %353 = vperm.xlu0 %352, %v21
  %v354 = vpop.permute.xlu0 %353
  %356 = vset.pattern.permute.xlu0 3
  %357 = vperm.xlu0 %356, %v22
  %v358 = vpop.permute.xlu0 %357
  %360 = vset.pattern.permute.xlu0 3
  %361 = vperm.xlu0 %360, %v23
  %v362 = vpop.permute.xlu0 %361
  %364 = vset.pattern.permute.xlu0 3
  %365 = vperm.xlu0 %364, %v24
  %v366 = vpop.permute.xlu0 %365
  %368 = vset.pattern.permute.xlu0 3
  %369 = vperm.xlu0 %368, %v25
  %v370 = vpop.permute.xlu0 %369
  %372 = vset.pattern.permute.xlu0 3
  %373 = vperm.xlu0 %372, %v26
  %v374 = vpop.permute.xlu0 %373
  %376 = vset.pattern.permute.xlu0 3
  %377 = vperm.xlu0 %376, %v27
  %v378 = vpop.permute.xlu0 %377
  %380 = vset.pattern.permute.xlu0 3
  %381 = vperm.xlu0 %380, %v28
  %v382 = vpop.permute.xlu0 %381
  %384 = vset.pattern.permute.xlu0 3
  %385 = vperm.xlu0 %384, %v29
  %v386 = vpop.permute.xlu0 %385
  %388 = vset.pattern.permute.xlu0 3
  %389 = vperm.xlu0 %388, %v30
  %v390 = vpop.permute.xlu0 %389
  %392 = vset.pattern.permute.xlu0 3
  %393 = vperm.xlu0 %392, %v31
  %v394 = vpop.permute.xlu0 %393
  %396 = vset.pattern.permute.xlu0 3
  %397 = vperm.xlu0 %396, %v32
  %v398 = vpop.permute.xlu0 %397
  %v400 = vlaneseq
  %v401 = vshrl.u32 %v400, 7
  %v402 = vsub.s32 3, %v401
  %v403 = vrot.slane %v33, %v402
  %v404 = vmul.f32 %v338, %v403
  %v405 = vmul.f32 %v342, %v403
  %v406 = vmul.f32 %v346, %v403
  %v407 = vmul.f32 %v350, %v403
  %v408 = vmul.f32 %v354, %v403
  %v409 = vmul.f32 %v358, %v403
  %v410 = vmul.f32 %v362, %v403
  %v411 = vmul.f32 %v366, %v403
  %v412 = vmul.f32 %v370, %v403
  %v413 = vmul.f32 %v374, %v403
  %v414 = vmul.f32 %v378, %v403
  %v415 = vmul.f32 %v382, %v403
  %v416 = vmul.f32 %v386, %v403
  %v417 = vmul.f32 %v390, %v403
  %v418 = vmul.f32 %v394, %v403
  %v419 = vmul.f32 %v398, %v403
  %v420 = vadd.f32 %v320, %v404
  %v421 = vadd.f32 %v321, %v405
  %v422 = vadd.f32 %v322, %v406
  %v423 = vadd.f32 %v323, %v407
  %v424 = vadd.f32 %v324, %v408
  %v425 = vadd.f32 %v325, %v409
  %v426 = vadd.f32 %v326, %v410
  %v427 = vadd.f32 %v327, %v411
  %v428 = vadd.f32 %v328, %v412
  %v429 = vadd.f32 %v329, %v413
  %v430 = vadd.f32 %v330, %v414
  %v431 = vadd.f32 %v331, %v415
  %v432 = vadd.f32 %v332, %v416
  %v433 = vadd.f32 %v333, %v417
  %v434 = vadd.f32 %v334, %v418
  %v435 = vadd.f32 %v335, %v419
  %v437 = vlaneseq
  %v438 = vshrl.u32 %v437, 7
  %v439 = vsub.s32 0, %v438
  %v440 = vrot.slane %v35, %v439
  %v442 = vadd.f32 %v420, %v440
  %v443 = vadd.f32 %v421, %v440
  %v444 = vadd.f32 %v422, %v440
  %v445 = vadd.f32 %v423, %v440
  %v446 = vadd.f32 %v424, %v440
  %v447 = vadd.f32 %v425, %v440
  %v448 = vadd.f32 %v426, %v440
  %v449 = vadd.f32 %v427, %v440
  %v450 = vadd.f32 %v428, %v440
  %v451 = vadd.f32 %v429, %v440
  %v452 = vadd.f32 %v430, %v440
  %v453 = vadd.f32 %v431, %v440
  %v454 = vadd.f32 %v432, %v440
  %v455 = vadd.f32 %v433, %v440
  %v456 = vadd.f32 %v434, %v440
  %v457 = vadd.f32 %v435, %v440
  %vm458 = vcmask 123904
  %459 = vst.msk [vmem:[#allocation2] sm:$0x3] %vm458, %v442
  %460 = vst.msk [vmem:[#allocation2 + $0x2] sm:$0x3] %vm458, %v443
  %461 = vst.msk [vmem:[#allocation2 + $0x4] sm:$0x3] %vm458, %v444
  %462 = vst.msk [vmem:[#allocation2 + $0x6] sm:$0x3] %vm458, %v445
  %463 = vst.msk [vmem:[#allocation2 + $0x8] sm:$0x3] %vm458, %v446
  %464 = vst.msk [vmem:[#allocation2 + $0xa] sm:$0x3] %vm458, %v447
  %465 = vst.msk [vmem:[#allocation2 + $0xc] sm:$0x3] %vm458, %v448
  %466 = vst.msk [vmem:[#allocation2 + $0xe] sm:$0x3] %vm458, %v449
  %467 = vst.msk [vmem:[#allocation2 + $0x10] sm:$0x3] %vm458, %v450
  %468 = vst.msk [vmem:[#allocation2 + $0x12] sm:$0x3] %vm458, %v451
  %469 = vst.msk [vmem:[#allocation2 + $0x14] sm:$0x3] %vm458, %v452
  %470 = vst.msk [vmem:[#allocation2 + $0x16] sm:$0x3] %vm458, %v453
  %471 = vst.msk [vmem:[#allocation2 + $0x18] sm:$0x3] %vm458, %v454
  %472 = vst.msk [vmem:[#allocation2 + $0x1a] sm:$0x3] %vm458, %v455
  %473 = vst.msk [vmem:[#allocation2 + $0x1c] sm:$0x3] %vm458, %v456
  %474 = vst.msk [vmem:[#allocation2 + $0x1e] sm:$0x3] %vm458, %v457
  %vm475 = vcmask 25600
  %476 = vst.msk [vmem:[#allocation4] sm:$0x3] %vm475, 0.0
  %477 = vst.msk [vmem:[#allocation5] sm:$0x3] %vm475, 0.0
  %v478 = vld [vmem:[#allocation2] sm:$0x3]
  %v479 = vld [vmem:[#allocation4] sm:$0x3]
  %481 = vset.pattern.permute.xlu0 0
  %482 = vperm.xlu0 %481, %v479
  %v483 = vpop.permute.xlu0 %482
  %v485 = vlaneseq
  %v486 = vshrl.u32 %v485, 7
  %v487 = vsub.s32 0, %v486
  %v488 = vrot.slane %v34, %v487
  %v489 = vmul.f32 %v483, %v488
  %490 = vset.pattern.permute.xlu0 1
  %491 = vperm.xlu0 %490, %v479
  %v492 = vpop.permute.xlu0 %491
  %v494 = vlaneseq
  %v495 = vshrl.u32 %v494, 7
  %v496 = vsub.s32 1, %v495
  %v497 = vrot.slane %v34, %v496
  %v498 = vmul.f32 %v492, %v497
  %v499 = vadd.f32 %v489, %v498
  %500 = vset.pattern.permute.xlu0 2
  %501 = vperm.xlu0 %500, %v479
  %v502 = vpop.permute.xlu0 %501
  %v504 = vlaneseq
  %v505 = vshrl.u32 %v504, 7
  %v506 = vsub.s32 2, %v505
  %v507 = vrot.slane %v34, %v506
  %v508 = vmul.f32 %v502, %v507
  %v509 = vadd.f32 %v499, %v508
  %510 = vset.pattern.permute.xlu0 3
  %511 = vperm.xlu0 %510, %v479
  %v512 = vpop.permute.xlu0 %511
  %v514 = vlaneseq
  %v515 = vshrl.u32 %v514, 7
  %v516 = vsub.s32 3, %v515
  %v517 = vrot.slane %v34, %v516
  %v518 = vmul.f32 %v512, %v517
  %v519 = vadd.f32 %v509, %v518
  %v520 = vadd.f32 %v478, %v519
  %v521 = vxor.u32 %v520, 2147483648
  %v522 = vmul.f32 %v521, 1.442695
  %v523 = vpow.pop %v522
  %v524 = vadd.f32 %v523, 1.0
  %v525 = vrcp.pop %v524
  %v526 = vmul.f32 1.0, %v525
  %v527 = vtanh.pop %v520
  %v528 = vld [vmem:[#allocation5] sm:$0x3]
  %530 = vrot.lane.b32.xlu0 %v528, 4
  %v531 = vpop.permute.xlu0 %530
  %v533 = vmul.f32 %v526, %v531
  %535 = vrot.lane.b32.xlu0 %v527, 116
  %v536 = vpop.permute.xlu0 %535
  %v538 = vmul.f32 %v526, %v536
  %540 = vrot.lane.b32.xlu0 %v538, 4
  %v541 = vpop.permute.xlu0 %540
  %v543 = vadd.f32 %v533, %v541
  %v544 = vtanh.pop %v543
  %546 = vrot.lane.b32.xlu0 %v544, 4
  %v547 = vpop.permute.xlu0 %546
  %v549 = vmul.f32 %v526, %v547
  %551 = vrot.lane.b32.xlu0 %v543, 124
  %v552 = vpop.permute.xlu0 %551
  %554 = vst.msk [vmem:[#allocation5] sm:$0x3] %vm475, %v552
  %556 = vrot.lane.b32.xlu0 %v549, 120
  %v557 = vpop.permute.xlu0 %556
  %559 = vst.msk [vmem:[#allocation4] sm:$0x3] %vm475, %v557
  %560 = vst.msk [vmem:[#allocation3] sm:$0x3] %vm475, %v557
  %s561 = scalar_lea.vmem [#allocation2], 2
  %v562 = vld [vmem:[%s561] sm:$0x3]
  %v563 = vld [vmem:[#allocation4] sm:$0x3]
  %565 = vset.pattern.permute.xlu0 0
  %566 = vperm.xlu0 %565, %v563
  %v567 = vpop.permute.xlu0 %566
  %v569 = vmul.f32 %v567, %v488
  %570 = vset.pattern.permute.xlu0 1
  %571 = vperm.xlu0 %570, %v563
  %v572 = vpop.permute.xlu0 %571
  %v574 = vmul.f32 %v572, %v497
  %v575 = vadd.f32 %v569, %v574
  %576 = vset.pattern.permute.xlu0 2
  %577 = vperm.xlu0 %576, %v563
  %v578 = vpop.permute.xlu0 %577
  %v580 = vmul.f32 %v578, %v507
  %v581 = vadd.f32 %v575, %v580
  %582 = vset.pattern.permute.xlu0 3
  %583 = vperm.xlu0 %582, %v563
  %v584 = vpop.permute.xlu0 %583
  %v586 = vmul.f32 %v584, %v517
  %v587 = vadd.f32 %v581, %v586
  %v588 = vadd.f32 %v562, %v587
  %v589 = vxor.u32 %v588, 2147483648
  %v590 = vmul.f32 %v589, 1.442695
  %v591 = vpow.pop %v590
  %v592 = vadd.f32 %v591, 1.0
  %v593 = vrcp.pop %v592
  %v594 = vmul.f32 1.0, %v593
  %v595 = vtanh.pop %v588
  %v596 = vld [vmem:[#allocation5] sm:$0x3]
  %598 = vrot.lane.b32.xlu0 %v596, 4
  %v599 = vpop.permute.xlu0 %598
  %v601 = vmul.f32 %v594, %v599
  %603 = vrot.lane.b32.xlu0 %v595, 116
  %v604 = vpop.permute.xlu0 %603
  %v606 = vmul.f32 %v594, %v604
  %608 = vrot.lane.b32.xlu0 %v606, 4
  %v609 = vpop.permute.xlu0 %608
  %v611 = vadd.f32 %v601, %v609
  %v612 = vtanh.pop %v611
  %614 = vrot.lane.b32.xlu0 %v612, 4
  %v615 = vpop.permute.xlu0 %614
  %v617 = vmul.f32 %v594, %v615
  %619 = vrot.lane.b32.xlu0 %v611, 124
  %v620 = vpop.permute.xlu0 %619
  %622 = vst.msk [vmem:[#allocation5] sm:$0x3] %vm475, %v620
  %624 = vrot.lane.b32.xlu0 %v617, 120
  %v625 = vpop.permute.xlu0 %624
  %627 = vst.msk [vmem:[#allocation4] sm:$0x3] %vm475, %v625
  %s628 = scalar_lea.vmem [#allocation3], 2
  %629 = vst.msk [vmem:[%s628] sm:$0x3] %vm475, %v625
  %s630 = scalar_lea.vmem [#allocation2], 4
  %v631 = vld [vmem:[%s630] sm:$0x3]
  %v632 = vld [vmem:[#allocation4] sm:$0x3]
  %634 = vset.pattern.permute.xlu0 0
  %635 = vperm.xlu0 %634, %v632
  %v636 = vpop.permute.xlu0 %635
  %v638 = vmul.f32 %v636, %v488
  %639 = vset.pattern.permute.xlu0 1
  %640 = vperm.xlu0 %639, %v632
  %v641 = vpop.permute.xlu0 %640
  %v643 = vmul.f32 %v641, %v497
  %v644 = vadd.f32 %v638, %v643
  %645 = vset.pattern.permute.xlu0 2
  %646 = vperm.xlu0 %645, %v632
  %v647 = vpop.permute.xlu0 %646
  %v649 = vmul.f32 %v647, %v507
  %v650 = vadd.f32 %v644, %v649
  %651 = vset.pattern.permute.xlu0 3
  %652 = vperm.xlu0 %651, %v632
  %v653 = vpop.permute.xlu0 %652
  %v655 = vmul.f32 %v653, %v517
  %v656 = vadd.f32 %v650, %v655
  %v657 = vadd.f32 %v631, %v656
  %v658 = vxor.u32 %v657, 2147483648
  %v659 = vmul.f32 %v658, 1.442695
  %v660 = vpow.pop %v659
  %v661 = vadd.f32 %v660, 1.0
  %v662 = vrcp.pop %v661
  %v663 = vmul.f32 1.0, %v662
  %v664 = vtanh.pop %v657
  %v665 = vld [vmem:[#allocation5] sm:$0x3]
  %667 = vrot.lane.b32.xlu0 %v665, 4
  %v668 = vpop.permute.xlu0 %667
  %v670 = vmul.f32 %v663, %v668
  %672 = vrot.lane.b32.xlu0 %v664, 116
  %v673 = vpop.permute.xlu0 %672
  %v675 = vmul.f32 %v663, %v673
  %677 = vrot.lane.b32.xlu0 %v675, 4
  %v678 = vpop.permute.xlu0 %677
  %v680 = vadd.f32 %v670, %v678
  %v681 = vtanh.pop %v680
  %683 = vrot.lane.b32.xlu0 %v681, 4
  %v684 = vpop.permute.xlu0 %683
  %v686 = vmul.f32 %v663, %v684
  %688 = vrot.lane.b32.xlu0 %v680, 124
  %v689 = vpop.permute.xlu0 %688
  %691 = vst.msk [vmem:[#allocation5] sm:$0x3] %vm475, %v689
  %693 = vrot.lane.b32.xlu0 %v686, 120
  %v694 = vpop.permute.xlu0 %693
  %696 = vst.msk [vmem:[#allocation4] sm:$0x3] %vm475, %v694
  %s697 = scalar_lea.vmem [#allocation3], 4
  %698 = vst.msk [vmem:[%s697] sm:$0x3] %vm475, %v694
  %s699 = scalar_lea.vmem [#allocation2], 6
  %v700 = vld [vmem:[%s699] sm:$0x3]
  %v701 = vld [vmem:[#allocation4] sm:$0x3]
  %703 = vset.pattern.permute.xlu0 0
  %704 = vperm.xlu0 %703, %v701
  %v705 = vpop.permute.xlu0 %704
  %v707 = vmul.f32 %v705, %v488
  %708 = vset.pattern.permute.xlu0 1
  %709 = vperm.xlu0 %708, %v701
  %v710 = vpop.permute.xlu0 %709
  %v712 = vmul.f32 %v710, %v497
  %v713 = vadd.f32 %v707, %v712
  %714 = vset.pattern.permute.xlu0 2
  %715 = vperm.xlu0 %714, %v701
  %v716 = vpop.permute.xlu0 %715
  %v718 = vmul.f32 %v716, %v507
  %v719 = vadd.f32 %v713, %v718
  %720 = vset.pattern.permute.xlu0 3
  %721 = vperm.xlu0 %720, %v701
  %v722 = vpop.permute.xlu0 %721
  %v724 = vmul.f32 %v722, %v517
  %v725 = vadd.f32 %v719, %v724
  %v726 = vadd.f32 %v700, %v725
  %v727 = vxor.u32 %v726, 2147483648
  %v728 = vmul.f32 %v727, 1.442695
  %v729 = vpow.pop %v728
  %v730 = vadd.f32 %v729, 1.0
  %v731 = vrcp.pop %v730
  %v732 = vmul.f32 1.0, %v731
  %v733 = vtanh.pop %v726
  %v734 = vld [vmem:[#allocation5] sm:$0x3]
  %736 = vrot.lane.b32.xlu0 %v734, 4
  %v737 = vpop.permute.xlu0 %736
  %v739 = vmul.f32 %v732, %v737
  %741 = vrot.lane.b32.xlu0 %v733, 116
  %v742 = vpop.permute.xlu0 %741
  %v744 = vmul.f32 %v732, %v742
  %746 = vrot.lane.b32.xlu0 %v744, 4
  %v747 = vpop.permute.xlu0 %746
  %v749 = vadd.f32 %v739, %v747
  %v750 = vtanh.pop %v749
  %752 = vrot.lane.b32.xlu0 %v750, 4
  %v753 = vpop.permute.xlu0 %752
  %v755 = vmul.f32 %v732, %v753
  %757 = vrot.lane.b32.xlu0 %v749, 124
  %v758 = vpop.permute.xlu0 %757
  %760 = vst.msk [vmem:[#allocation5] sm:$0x3] %vm475, %v758
  %762 = vrot.lane.b32.xlu0 %v755, 120
  %v763 = vpop.permute.xlu0 %762
  %765 = vst.msk [vmem:[#allocation4] sm:$0x3] %vm475, %v763
  %s766 = scalar_lea.vmem [#allocation3], 6
  %767 = vst.msk [vmem:[%s766] sm:$0x3] %vm475, %v763
  %s768 = scalar_lea.vmem [#allocation2], 8
  %v769 = vld [vmem:[%s768] sm:$0x3]
  %v770 = vld [vmem:[#allocation4] sm:$0x3]
  %772 = vset.pattern.permute.xlu0 0
  %773 = vperm.xlu0 %772, %v770
  %v774 = vpop.permute.xlu0 %773
  %v776 = vmul.f32 %v774, %v488
  %777 = vset.pattern.permute.xlu0 1
  %778 = vperm.xlu0 %777, %v770
  %v779 = vpop.permute.xlu0 %778
  %v781 = vmul.f32 %v779, %v497
  %v782 = vadd.f32 %v776, %v781
  %783 = vset.pattern.permute.xlu0 2
  %784 = vperm.xlu0 %783, %v770
  %v785 = vpop.permute.xlu0 %784
  %v787 = vmul.f32 %v785, %v507
  %v788 = vadd.f32 %v782, %v787
  %789 = vset.pattern.permute.xlu0 3
  %790 = vperm.xlu0 %789, %v770
  %v791 = vpop.permute.xlu0 %790
  %v793 = vmul.f32 %v791, %v517
  %v794 = vadd.f32 %v788, %v793
  %v795 = vadd.f32 %v769, %v794
  %v796 = vxor.u32 %v795, 2147483648
  %v797 = vmul.f32 %v796, 1.442695
  %v798 = vpow.pop %v797
  %v799 = vadd.f32 %v798, 1.0
  %v800 = vrcp.pop %v799
  %v801 = vmul.f32 1.0, %v800
  %v802 = vtanh.pop %v795
  %v803 = vld [vmem:[#allocation5] sm:$0x3]
  %805 = vrot.lane.b32.xlu0 %v803, 4
  %v806 = vpop.permute.xlu0 %805
  %v808 = vmul.f32 %v801, %v806
  %810 = vrot.lane.b32.xlu0 %v802, 116
  %v811 = vpop.permute.xlu0 %810
  %v813 = vmul.f32 %v801, %v811
  %815 = vrot.lane.b32.xlu0 %v813, 4
  %v816 = vpop.permute.xlu0 %815
  %v818 = vadd.f32 %v808, %v816
  %v819 = vtanh.pop %v818
  %821 = vrot.lane.b32.xlu0 %v819, 4
  %v822 = vpop.permute.xlu0 %821
  %v824 = vmul.f32 %v801, %v822
  %826 = vrot.lane.b32.xlu0 %v818, 124
  %v827 = vpop.permute.xlu0 %826
  %829 = vst.msk [vmem:[#allocation5] sm:$0x3] %vm475, %v827
  %831 = vrot.lane.b32.xlu0 %v824, 120
  %v832 = vpop.permute.xlu0 %831
  %834 = vst.msk [vmem:[#allocation4] sm:$0x3] %vm475, %v832
  %s835 = scalar_lea.vmem [#allocation3], 8
  %836 = vst.msk [vmem:[%s835] sm:$0x3] %vm475, %v832
  %s837 = scalar_lea.vmem [#allocation2], 10
  %v838 = vld [vmem:[%s837] sm:$0x3]
  %v839 = vld [vmem:[#allocation4] sm:$0x3]
  %841 = vset.pattern.permute.xlu0 0
  %842 = vperm.xlu0 %841, %v839
  %v843 = vpop.permute.xlu0 %842
  %v845 = vmul.f32 %v843, %v488
  %846 = vset.pattern.permute.xlu0 1
  %847 = vperm.xlu0 %846, %v839
  %v848 = vpop.permute.xlu0 %847
  %v850 = vmul.f32 %v848, %v497
  %v851 = vadd.f32 %v845, %v850
  %852 = vset.pattern.permute.xlu0 2
  %853 = vperm.xlu0 %852, %v839
  %v854 = vpop.permute.xlu0 %853
  %v856 = vmul.f32 %v854, %v507
  %v857 = vadd.f32 %v851, %v856
  %858 = vset.pattern.permute.xlu0 3
  %859 = vperm.xlu0 %858, %v839
  %v860 = vpop.permute.xlu0 %859
  %v862 = vmul.f32 %v860, %v517
  %v863 = vadd.f32 %v857, %v862
  %v864 = vadd.f32 %v838, %v863
  %v865 = vxor.u32 %v864, 2147483648
  %v866 = vmul.f32 %v865, 1.442695
  %v867 = vpow.pop %v866
  %v868 = vadd.f32 %v867, 1.0
  %v869 = vrcp.pop %v868
  %v870 = vmul.f32 1.0, %v869
  %v871 = vtanh.pop %v864
  %v872 = vld [vmem:[#allocation5] sm:$0x3]
  %874 = vrot.lane.b32.xlu0 %v872, 4
  %v875 = vpop.permute.xlu0 %874
  %v877 = vmul.f32 %v870, %v875
  %879 = vrot.lane.b32.xlu0 %v871, 116
  %v880 = vpop.permute.xlu0 %879
  %v882 = vmul.f32 %v870, %v880
  %884 = vrot.lane.b32.xlu0 %v882, 4
  %v885 = vpop.permute.xlu0 %884
  %v887 = vadd.f32 %v877, %v885
  %v888 = vtanh.pop %v887
  %890 = vrot.lane.b32.xlu0 %v888, 4
  %v891 = vpop.permute.xlu0 %890
  %v893 = vmul.f32 %v870, %v891
  %895 = vrot.lane.b32.xlu0 %v887, 124
  %v896 = vpop.permute.xlu0 %895
  %898 = vst.msk [vmem:[#allocation5] sm:$0x3] %vm475, %v896
  %900 = vrot.lane.b32.xlu0 %v893, 120
  %v901 = vpop.permute.xlu0 %900
  %903 = vst.msk [vmem:[#allocation4] sm:$0x3] %vm475, %v901
  %s904 = scalar_lea.vmem [#allocation3], 10
  %905 = vst.msk [vmem:[%s904] sm:$0x3] %vm475, %v901
  %s906 = scalar_lea.vmem [#allocation2], 12
  %v907 = vld [vmem:[%s906] sm:$0x3]
  %v908 = vld [vmem:[#allocation4] sm:$0x3]
  %910 = vset.pattern.permute.xlu0 0
  %911 = vperm.xlu0 %910, %v908
  %v912 = vpop.permute.xlu0 %911
  %v914 = vmul.f32 %v912, %v488
  %915 = vset.pattern.permute.xlu0 1
  %916 = vperm.xlu0 %915, %v908
  %v917 = vpop.permute.xlu0 %916
  %v919 = vmul.f32 %v917, %v497
  %v920 = vadd.f32 %v914, %v919
  %921 = vset.pattern.permute.xlu0 2
  %922 = vperm.xlu0 %921, %v908
  %v923 = vpop.permute.xlu0 %922
  %v925 = vmul.f32 %v923, %v507
  %v926 = vadd.f32 %v920, %v925
  %927 = vset.pattern.permute.xlu0 3
  %928 = vperm.xlu0 %927, %v908
  %v929 = vpop.permute.xlu0 %928
  %v931 = vmul.f32 %v929, %v517
  %v932 = vadd.f32 %v926, %v931
  %v933 = vadd.f32 %v907, %v932
  %v934 = vxor.u32 %v933, 2147483648
  %v935 = vmul.f32 %v934, 1.442695
  %v936 = vpow.pop %v935
  %v937 = vadd.f32 %v936, 1.0
  %v938 = vrcp.pop %v937
  %v939 = vmul.f32 1.0, %v938
  %v940 = vtanh.pop %v933
  %v941 = vld [vmem:[#allocation5] sm:$0x3]
  %943 = vrot.lane.b32.xlu0 %v941, 4
  %v944 = vpop.permute.xlu0 %943
  %v946 = vmul.f32 %v939, %v944
  %948 = vrot.lane.b32.xlu0 %v940, 116
  %v949 = vpop.permute.xlu0 %948
  %v951 = vmul.f32 %v939, %v949
  %953 = vrot.lane.b32.xlu0 %v951, 4
  %v954 = vpop.permute.xlu0 %953
  %v956 = vadd.f32 %v946, %v954
  %v957 = vtanh.pop %v956
  %959 = vrot.lane.b32.xlu0 %v957, 4
  %v960 = vpop.permute.xlu0 %959
  %v962 = vmul.f32 %v939, %v960
  %964 = vrot.lane.b32.xlu0 %v956, 124
  %v965 = vpop.permute.xlu0 %964
  %967 = vst.msk [vmem:[#allocation5] sm:$0x3] %vm475, %v965
  %969 = vrot.lane.b32.xlu0 %v962, 120
  %v970 = vpop.permute.xlu0 %969
  %972 = vst.msk [vmem:[#allocation4] sm:$0x3] %vm475, %v970
  %s973 = scalar_lea.vmem [#allocation3], 12
  %974 = vst.msk [vmem:[%s973] sm:$0x3] %vm475, %v970
  %s975 = scalar_lea.vmem [#allocation2], 14
  %v976 = vld [vmem:[%s975] sm:$0x3]
  %v977 = vld [vmem:[#allocation4] sm:$0x3]
  %979 = vset.pattern.permute.xlu0 0
  %980 = vperm.xlu0 %979, %v977
  %v981 = vpop.permute.xlu0 %980
  %v983 = vmul.f32 %v981, %v488
  %984 = vset.pattern.permute.xlu0 1
  %985 = vperm.xlu0 %984, %v977
  %v986 = vpop.permute.xlu0 %985
  %v988 = vmul.f32 %v986, %v497
  %v989 = vadd.f32 %v983, %v988
  %990 = vset.pattern.permute.xlu0 2
  %991 = vperm.xlu0 %990, %v977
  %v992 = vpop.permute.xlu0 %991
  %v994 = vmul.f32 %v992, %v507
  %v995 = vadd.f32 %v989, %v994
  %996 = vset.pattern.permute.xlu0 3
  %997 = vperm.xlu0 %996, %v977
  %v998 = vpop.permute.xlu0 %997
  %v1000 = vmul.f32 %v998, %v517
  %v1001 = vadd.f32 %v995, %v1000
  %v1002 = vadd.f32 %v976, %v1001
  %v1003 = vxor.u32 %v1002, 2147483648
  %v1004 = vmul.f32 %v1003, 1.442695
  %v1005 = vpow.pop %v1004
  %v1006 = vadd.f32 %v1005, 1.0
  %v1007 = vrcp.pop %v1006
  %v1008 = vmul.f32 1.0, %v1007
  %v1009 = vtanh.pop %v1002
  %v1010 = vld [vmem:[#allocation5] sm:$0x3]
  %1012 = vrot.lane.b32.xlu0 %v1010, 4
  %v1013 = vpop.permute.xlu0 %1012
  %v1015 = vmul.f32 %v1008, %v1013
  %1017 = vrot.lane.b32.xlu0 %v1009, 116
  %v1018 = vpop.permute.xlu0 %1017
  %v1020 = vmul.f32 %v1008, %v1018
  %1022 = vrot.lane.b32.xlu0 %v1020, 4
  %v1023 = vpop.permute.xlu0 %1022
  %v1025 = vadd.f32 %v1015, %v1023
  %v1026 = vtanh.pop %v1025
  %1028 = vrot.lane.b32.xlu0 %v1026, 4
  %v1029 = vpop.permute.xlu0 %1028
  %v1031 = vmul.f32 %v1008, %v1029
  %1033 = vrot.lane.b32.xlu0 %v1025, 124
  %v1034 = vpop.permute.xlu0 %1033
  %1036 = vst.msk [vmem:[#allocation5] sm:$0x3] %vm475, %v1034
  %1038 = vrot.lane.b32.xlu0 %v1031, 120
  %v1039 = vpop.permute.xlu0 %1038
  %1041 = vst.msk [vmem:[#allocation4] sm:$0x3] %vm475, %v1039
  %s1042 = scalar_lea.vmem [#allocation3], 14
  %1043 = vst.msk [vmem:[%s1042] sm:$0x3] %vm475, %v1039
  %s1044 = scalar_lea.vmem [#allocation2], 16
  %v1045 = vld [vmem:[%s1044] sm:$0x3]
  %v1046 = vld [vmem:[#allocation4] sm:$0x3]
  %1048 = vset.pattern.permute.xlu0 0
  %1049 = vperm.xlu0 %1048, %v1046
  %v1050 = vpop.permute.xlu0 %1049
  %v1052 = vmul.f32 %v1050, %v488
  %1053 = vset.pattern.permute.xlu0 1
  %1054 = vperm.xlu0 %1053, %v1046
  %v1055 = vpop.permute.xlu0 %1054
  %v1057 = vmul.f32 %v1055, %v497
  %v1058 = vadd.f32 %v1052, %v1057
  %1059 = vset.pattern.permute.xlu0 2
  %1060 = vperm.xlu0 %1059, %v1046
  %v1061 = vpop.permute.xlu0 %1060
  %v1063 = vmul.f32 %v1061, %v507
  %v1064 = vadd.f32 %v1058, %v1063
  %1065 = vset.pattern.permute.xlu0 3
  %1066 = vperm.xlu0 %1065, %v1046
  %v1067 = vpop.permute.xlu0 %1066
  %v1069 = vmul.f32 %v1067, %v517
  %v1070 = vadd.f32 %v1064, %v1069
  %v1071 = vadd.f32 %v1045, %v1070
  %v1072 = vxor.u32 %v1071, 2147483648
  %v1073 = vmul.f32 %v1072, 1.442695
  %v1074 = vpow.pop %v1073
  %v1075 = vadd.f32 %v1074, 1.0
  %v1076 = vrcp.pop %v1075
  %v1077 = vmul.f32 1.0, %v1076
  %v1078 = vtanh.pop %v1071
  %v1079 = vld [vmem:[#allocation5] sm:$0x3]
  %1081 = vrot.lane.b32.xlu0 %v1079, 4
  %v1082 = vpop.permute.xlu0 %1081
  %v1084 = vmul.f32 %v1077, %v1082
  %1086 = vrot.lane.b32.xlu0 %v1078, 116
  %v1087 = vpop.permute.xlu0 %1086
  %v1089 = vmul.f32 %v1077, %v1087
  %1091 = vrot.lane.b32.xlu0 %v1089, 4
  %v1092 = vpop.permute.xlu0 %1091
  %v1094 = vadd.f32 %v1084, %v1092
  %v1095 = vtanh.pop %v1094
  %1097 = vrot.lane.b32.xlu0 %v1095, 4
  %v1098 = vpop.permute.xlu0 %1097
  %v1100 = vmul.f32 %v1077, %v1098
  %1102 = vrot.lane.b32.xlu0 %v1094, 124
  %v1103 = vpop.permute.xlu0 %1102
  %1105 = vst.msk [vmem:[#allocation5] sm:$0x3] %vm475, %v1103
  %1107 = vrot.lane.b32.xlu0 %v1100, 120
  %v1108 = vpop.permute.xlu0 %1107
  %1110 = vst.msk [vmem:[#allocation4] sm:$0x3] %vm475, %v1108
  %s1111 = scalar_lea.vmem [#allocation3], 16
  %1112 = vst.msk [vmem:[%s1111] sm:$0x3] %vm475, %v1108
  %s1113 = scalar_lea.vmem [#allocation2], 18
  %v1114 = vld [vmem:[%s1113] sm:$0x3]
  %v1115 = vld [vmem:[#allocation4] sm:$0x3]
  %1117 = vset.pattern.permute.xlu0 0
  %1118 = vperm.xlu0 %1117, %v1115
  %v1119 = vpop.permute.xlu0 %1118
  %v1121 = vmul.f32 %v1119, %v488
  %1122 = vset.pattern.permute.xlu0 1
  %1123 = vperm.xlu0 %1122, %v1115
  %v1124 = vpop.permute.xlu0 %1123
  %v1126 = vmul.f32 %v1124, %v497
  %v1127 = vadd.f32 %v1121, %v1126
  %1128 = vset.pattern.permute.xlu0 2
  %1129 = vperm.xlu0 %1128, %v1115
  %v1130 = vpop.permute.xlu0 %1129
  %v1132 = vmul.f32 %v1130, %v507
  %v1133 = vadd.f32 %v1127, %v1132
  %1134 = vset.pattern.permute.xlu0 3
  %1135 = vperm.xlu0 %1134, %v1115
  %v1136 = vpop.permute.xlu0 %1135
  %v1138 = vmul.f32 %v1136, %v517
  %v1139 = vadd.f32 %v1133, %v1138
  %v1140 = vadd.f32 %v1114, %v1139
  %v1141 = vxor.u32 %v1140, 2147483648
  %v1142 = vmul.f32 %v1141, 1.442695
  %v1143 = vpow.pop %v1142
  %v1144 = vadd.f32 %v1143, 1.0
  %v1145 = vrcp.pop %v1144
  %v1146 = vmul.f32 1.0, %v1145
  %v1147 = vtanh.pop %v1140
  %v1148 = vld [vmem:[#allocation5] sm:$0x3]
  %1150 = vrot.lane.b32.xlu0 %v1148, 4
  %v1151 = vpop.permute.xlu0 %1150
  %v1153 = vmul.f32 %v1146, %v1151
  %1155 = vrot.lane.b32.xlu0 %v1147, 116
  %v1156 = vpop.permute.xlu0 %1155
  %v1158 = vmul.f32 %v1146, %v1156
  %1160 = vrot.lane.b32.xlu0 %v1158, 4
  %v1161 = vpop.permute.xlu0 %1160
  %v1163 = vadd.f32 %v1153, %v1161
  %v1164 = vtanh.pop %v1163
  %1166 = vrot.lane.b32.xlu0 %v1164, 4
  %v1167 = vpop.permute.xlu0 %1166
  %v1169 = vmul.f32 %v1146, %v1167
  %1171 = vrot.lane.b32.xlu0 %v1163, 124
  %v1172 = vpop.permute.xlu0 %1171
  %1174 = vst.msk [vmem:[#allocation5] sm:$0x3] %vm475, %v1172
  %1176 = vrot.lane.b32.xlu0 %v1169, 120
  %v1177 = vpop.permute.xlu0 %1176
  %1179 = vst.msk [vmem:[#allocation4] sm:$0x3] %vm475, %v1177
  %s1180 = scalar_lea.vmem [#allocation3], 18
  %1181 = vst.msk [vmem:[%s1180] sm:$0x3] %vm475, %v1177
  %s1182 = scalar_lea.vmem [#allocation2], 20
  %v1183 = vld [vmem:[%s1182] sm:$0x3]
  %v1184 = vld [vmem:[#allocation4] sm:$0x3]
  %1186 = vset.pattern.permute.xlu0 0
  %1187 = vperm.xlu0 %1186, %v1184
  %v1188 = vpop.permute.xlu0 %1187
  %v1190 = vmul.f32 %v1188, %v488
  %1191 = vset.pattern.permute.xlu0 1
  %1192 = vperm.xlu0 %1191, %v1184
  %v1193 = vpop.permute.xlu0 %1192
  %v1195 = vmul.f32 %v1193, %v497
  %v1196 = vadd.f32 %v1190, %v1195
  %1197 = vset.pattern.permute.xlu0 2
  %1198 = vperm.xlu0 %1197, %v1184
  %v1199 = vpop.permute.xlu0 %1198
  %v1201 = vmul.f32 %v1199, %v507
  %v1202 = vadd.f32 %v1196, %v1201
  %1203 = vset.pattern.permute.xlu0 3
  %1204 = vperm.xlu0 %1203, %v1184
  %v1205 = vpop.permute.xlu0 %1204
  %v1207 = vmul.f32 %v1205, %v517
  %v1208 = vadd.f32 %v1202, %v1207
  %v1209 = vadd.f32 %v1183, %v1208
  %v1210 = vxor.u32 %v1209, 2147483648
  %v1211 = vmul.f32 %v1210, 1.442695
  %v1212 = vpow.pop %v1211
  %v1213 = vadd.f32 %v1212, 1.0
  %v1214 = vrcp.pop %v1213
  %v1215 = vmul.f32 1.0, %v1214
  %v1216 = vtanh.pop %v1209
  %v1217 = vld [vmem:[#allocation5] sm:$0x3]
  %1219 = vrot.lane.b32.xlu0 %v1217, 4
  %v1220 = vpop.permute.xlu0 %1219
  %v1222 = vmul.f32 %v1215, %v1220
  %1224 = vrot.lane.b32.xlu0 %v1216, 116
  %v1225 = vpop.permute.xlu0 %1224
  %v1227 = vmul.f32 %v1215, %v1225
  %1229 = vrot.lane.b32.xlu0 %v1227, 4
  %v1230 = vpop.permute.xlu0 %1229
  %v1232 = vadd.f32 %v1222, %v1230
  %v1233 = vtanh.pop %v1232
  %1235 = vrot.lane.b32.xlu0 %v1233, 4
  %v1236 = vpop.permute.xlu0 %1235
  %v1238 = vmul.f32 %v1215, %v1236
  %1240 = vrot.lane.b32.xlu0 %v1232, 124
  %v1241 = vpop.permute.xlu0 %1240
  %1243 = vst.msk [vmem:[#allocation5] sm:$0x3] %vm475, %v1241
  %1245 = vrot.lane.b32.xlu0 %v1238, 120
  %v1246 = vpop.permute.xlu0 %1245
  %1248 = vst.msk [vmem:[#allocation4] sm:$0x3] %vm475, %v1246
  %s1249 = scalar_lea.vmem [#allocation3], 20
  %1250 = vst.msk [vmem:[%s1249] sm:$0x3] %vm475, %v1246
  %s1251 = scalar_lea.vmem [#allocation2], 22
  %v1252 = vld [vmem:[%s1251] sm:$0x3]
  %v1253 = vld [vmem:[#allocation4] sm:$0x3]
  %1255 = vset.pattern.permute.xlu0 0
  %1256 = vperm.xlu0 %1255, %v1253
  %v1257 = vpop.permute.xlu0 %1256
  %v1259 = vmul.f32 %v1257, %v488
  %1260 = vset.pattern.permute.xlu0 1
  %1261 = vperm.xlu0 %1260, %v1253
  %v1262 = vpop.permute.xlu0 %1261
  %v1264 = vmul.f32 %v1262, %v497
  %v1265 = vadd.f32 %v1259, %v1264
  %1266 = vset.pattern.permute.xlu0 2
  %1267 = vperm.xlu0 %1266, %v1253
  %v1268 = vpop.permute.xlu0 %1267
  %v1270 = vmul.f32 %v1268, %v507
  %v1271 = vadd.f32 %v1265, %v1270
  %1272 = vset.pattern.permute.xlu0 3
  %1273 = vperm.xlu0 %1272, %v1253
  %v1274 = vpop.permute.xlu0 %1273
  %v1276 = vmul.f32 %v1274, %v517
  %v1277 = vadd.f32 %v1271, %v1276
  %v1278 = vadd.f32 %v1252, %v1277
  %v1279 = vxor.u32 %v1278, 2147483648
  %v1280 = vmul.f32 %v1279, 1.442695
  %v1281 = vpow.pop %v1280
  %v1282 = vadd.f32 %v1281, 1.0
  %v1283 = vrcp.pop %v1282
  %v1284 = vmul.f32 1.0, %v1283
  %v1285 = vtanh.pop %v1278
  %v1286 = vld [vmem:[#allocation5] sm:$0x3]
  %1288 = vrot.lane.b32.xlu0 %v1286, 4
  %v1289 = vpop.permute.xlu0 %1288
  %v1291 = vmul.f32 %v1284, %v1289
  %1293 = vrot.lane.b32.xlu0 %v1285, 116
  %v1294 = vpop.permute.xlu0 %1293
  %v1296 = vmul.f32 %v1284, %v1294
  %1298 = vrot.lane.b32.xlu0 %v1296, 4
  %v1299 = vpop.permute.xlu0 %1298
  %v1301 = vadd.f32 %v1291, %v1299
  %v1302 = vtanh.pop %v1301
  %1304 = vrot.lane.b32.xlu0 %v1302, 4
  %v1305 = vpop.permute.xlu0 %1304
  %v1307 = vmul.f32 %v1284, %v1305
  %1309 = vrot.lane.b32.xlu0 %v1301, 124
  %v1310 = vpop.permute.xlu0 %1309
  %1312 = vst.msk [vmem:[#allocation5] sm:$0x3] %vm475, %v1310
  %1314 = vrot.lane.b32.xlu0 %v1307, 120
  %v1315 = vpop.permute.xlu0 %1314
  %1317 = vst.msk [vmem:[#allocation4] sm:$0x3] %vm475, %v1315
  %s1318 = scalar_lea.vmem [#allocation3], 22
  %1319 = vst.msk [vmem:[%s1318] sm:$0x3] %vm475, %v1315
  %s1320 = scalar_lea.vmem [#allocation2], 24
  %v1321 = vld [vmem:[%s1320] sm:$0x3]
  %v1322 = vld [vmem:[#allocation4] sm:$0x3]
  %1324 = vset.pattern.permute.xlu0 0
  %1325 = vperm.xlu0 %1324, %v1322
  %v1326 = vpop.permute.xlu0 %1325
  %v1328 = vmul.f32 %v1326, %v488
  %1329 = vset.pattern.permute.xlu0 1
  %1330 = vperm.xlu0 %1329, %v1322
  %v1331 = vpop.permute.xlu0 %1330
  %v1333 = vmul.f32 %v1331, %v497
  %v1334 = vadd.f32 %v1328, %v1333
  %1335 = vset.pattern.permute.xlu0 2
  %1336 = vperm.xlu0 %1335, %v1322
  %v1337 = vpop.permute.xlu0 %1336
  %v1339 = vmul.f32 %v1337, %v507
  %v1340 = vadd.f32 %v1334, %v1339
  %1341 = vset.pattern.permute.xlu0 3
  %1342 = vperm.xlu0 %1341, %v1322
  %v1343 = vpop.permute.xlu0 %1342
  %v1345 = vmul.f32 %v1343, %v517
  %v1346 = vadd.f32 %v1340, %v1345
  %v1347 = vadd.f32 %v1321, %v1346
  %v1348 = vxor.u32 %v1347, 2147483648
  %v1349 = vmul.f32 %v1348, 1.442695
  %v1350 = vpow.pop %v1349
  %v1351 = vadd.f32 %v1350, 1.0
  %v1352 = vrcp.pop %v1351
  %v1353 = vmul.f32 1.0, %v1352
  %v1354 = vtanh.pop %v1347
  %v1355 = vld [vmem:[#allocation5] sm:$0x3]
  %1357 = vrot.lane.b32.xlu0 %v1355, 4
  %v1358 = vpop.permute.xlu0 %1357
  %v1360 = vmul.f32 %v1353, %v1358
  %1362 = vrot.lane.b32.xlu0 %v1354, 116
  %v1363 = vpop.permute.xlu0 %1362
  %v1365 = vmul.f32 %v1353, %v1363
  %1367 = vrot.lane.b32.xlu0 %v1365, 4
  %v1368 = vpop.permute.xlu0 %1367
  %v1370 = vadd.f32 %v1360, %v1368
  %v1371 = vtanh.pop %v1370
  %1373 = vrot.lane.b32.xlu0 %v1371, 4
  %v1374 = vpop.permute.xlu0 %1373
  %v1376 = vmul.f32 %v1353, %v1374
  %1378 = vrot.lane.b32.xlu0 %v1370, 124
  %v1379 = vpop.permute.xlu0 %1378
  %1381 = vst.msk [vmem:[#allocation5] sm:$0x3] %vm475, %v1379
  %1383 = vrot.lane.b32.xlu0 %v1376, 120
  %v1384 = vpop.permute.xlu0 %1383
  %1386 = vst.msk [vmem:[#allocation4] sm:$0x3] %vm475, %v1384
  %s1387 = scalar_lea.vmem [#allocation3], 24
  %1388 = vst.msk [vmem:[%s1387] sm:$0x3] %vm475, %v1384
  %s1389 = scalar_lea.vmem [#allocation2], 26
  %v1390 = vld [vmem:[%s1389] sm:$0x3]
  %v1391 = vld [vmem:[#allocation4] sm:$0x3]
  %1393 = vset.pattern.permute.xlu0 0
  %1394 = vperm.xlu0 %1393, %v1391
  %v1395 = vpop.permute.xlu0 %1394
  %v1397 = vmul.f32 %v1395, %v488
  %1398 = vset.pattern.permute.xlu0 1
  %1399 = vperm.xlu0 %1398, %v1391
  %v1400 = vpop.permute.xlu0 %1399
  %v1402 = vmul.f32 %v1400, %v497
  %v1403 = vadd.f32 %v1397, %v1402
  %1404 = vset.pattern.permute.xlu0 2
  %1405 = vperm.xlu0 %1404, %v1391
  %v1406 = vpop.permute.xlu0 %1405
  %v1408 = vmul.f32 %v1406, %v507
  %v1409 = vadd.f32 %v1403, %v1408
  %1410 = vset.pattern.permute.xlu0 3
  %1411 = vperm.xlu0 %1410, %v1391
  %v1412 = vpop.permute.xlu0 %1411
  %v1414 = vmul.f32 %v1412, %v517
  %v1415 = vadd.f32 %v1409, %v1414
  %v1416 = vadd.f32 %v1390, %v1415
  %v1417 = vxor.u32 %v1416, 2147483648
  %v1418 = vmul.f32 %v1417, 1.442695
  %v1419 = vpow.pop %v1418
  %v1420 = vadd.f32 %v1419, 1.0
  %v1421 = vrcp.pop %v1420
  %v1422 = vmul.f32 1.0, %v1421
  %v1423 = vtanh.pop %v1416
  %v1424 = vld [vmem:[#allocation5] sm:$0x3]
  %1426 = vrot.lane.b32.xlu0 %v1424, 4
  %v1427 = vpop.permute.xlu0 %1426
  %v1429 = vmul.f32 %v1422, %v1427
  %1431 = vrot.lane.b32.xlu0 %v1423, 116
  %v1432 = vpop.permute.xlu0 %1431
  %v1434 = vmul.f32 %v1422, %v1432
  %1436 = vrot.lane.b32.xlu0 %v1434, 4
  %v1437 = vpop.permute.xlu0 %1436
  %v1439 = vadd.f32 %v1429, %v1437
  %v1440 = vtanh.pop %v1439
  %1442 = vrot.lane.b32.xlu0 %v1440, 4
  %v1443 = vpop.permute.xlu0 %1442
  %v1445 = vmul.f32 %v1422, %v1443
  %1447 = vrot.lane.b32.xlu0 %v1439, 124
  %v1448 = vpop.permute.xlu0 %1447
  %1450 = vst.msk [vmem:[#allocation5] sm:$0x3] %vm475, %v1448
  %1452 = vrot.lane.b32.xlu0 %v1445, 120
  %v1453 = vpop.permute.xlu0 %1452
  %1455 = vst.msk [vmem:[#allocation4] sm:$0x3] %vm475, %v1453
  %s1456 = scalar_lea.vmem [#allocation3], 26
  %1457 = vst.msk [vmem:[%s1456] sm:$0x3] %vm475, %v1453
  %s1458 = scalar_lea.vmem [#allocation2], 28
  %v1459 = vld [vmem:[%s1458] sm:$0x3]
  %v1460 = vld [vmem:[#allocation4] sm:$0x3]
  %1462 = vset.pattern.permute.xlu0 0
  %1463 = vperm.xlu0 %1462, %v1460
  %v1464 = vpop.permute.xlu0 %1463
  %v1466 = vmul.f32 %v1464, %v488
  %1467 = vset.pattern.permute.xlu0 1
  %1468 = vperm.xlu0 %1467, %v1460
  %v1469 = vpop.permute.xlu0 %1468
  %v1471 = vmul.f32 %v1469, %v497
  %v1472 = vadd.f32 %v1466, %v1471
  %1473 = vset.pattern.permute.xlu0 2
  %1474 = vperm.xlu0 %1473, %v1460
  %v1475 = vpop.permute.xlu0 %1474
  %v1477 = vmul.f32 %v1475, %v507
  %v1478 = vadd.f32 %v1472, %v1477
  %1479 = vset.pattern.permute.xlu0 3
  %1480 = vperm.xlu0 %1479, %v1460
  %v1481 = vpop.permute.xlu0 %1480
  %v1483 = vmul.f32 %v1481, %v517
  %v1484 = vadd.f32 %v1478, %v1483
  %v1485 = vadd.f32 %v1459, %v1484
  %v1486 = vxor.u32 %v1485, 2147483648
  %v1487 = vmul.f32 %v1486, 1.442695
  %v1488 = vpow.pop %v1487
  %v1489 = vadd.f32 %v1488, 1.0
  %v1490 = vrcp.pop %v1489
  %v1491 = vmul.f32 1.0, %v1490
  %v1492 = vtanh.pop %v1485
  %v1493 = vld [vmem:[#allocation5] sm:$0x3]
  %1495 = vrot.lane.b32.xlu0 %v1493, 4
  %v1496 = vpop.permute.xlu0 %1495
  %v1498 = vmul.f32 %v1491, %v1496
  %1500 = vrot.lane.b32.xlu0 %v1492, 116
  %v1501 = vpop.permute.xlu0 %1500
  %v1503 = vmul.f32 %v1491, %v1501
  %1505 = vrot.lane.b32.xlu0 %v1503, 4
  %v1506 = vpop.permute.xlu0 %1505
  %v1508 = vadd.f32 %v1498, %v1506
  %v1509 = vtanh.pop %v1508
  %1511 = vrot.lane.b32.xlu0 %v1509, 4
  %v1512 = vpop.permute.xlu0 %1511
  %v1514 = vmul.f32 %v1491, %v1512
  %1516 = vrot.lane.b32.xlu0 %v1508, 124
  %v1517 = vpop.permute.xlu0 %1516
  %1519 = vst.msk [vmem:[#allocation5] sm:$0x3] %vm475, %v1517
  %1521 = vrot.lane.b32.xlu0 %v1514, 120
  %v1522 = vpop.permute.xlu0 %1521
  %1524 = vst.msk [vmem:[#allocation4] sm:$0x3] %vm475, %v1522
  %s1525 = scalar_lea.vmem [#allocation3], 28
  %1526 = vst.msk [vmem:[%s1525] sm:$0x3] %vm475, %v1522
  %s1527 = scalar_lea.vmem [#allocation2], 30
  %v1528 = vld [vmem:[%s1527] sm:$0x3]
  %v1529 = vld [vmem:[#allocation4] sm:$0x3]
  %1531 = vset.pattern.permute.xlu0 0
  %1532 = vperm.xlu0 %1531, %v1529
  %v1533 = vpop.permute.xlu0 %1532
  %v1535 = vmul.f32 %v1533, %v488
  %1536 = vset.pattern.permute.xlu0 1
  %1537 = vperm.xlu0 %1536, %v1529
  %v1538 = vpop.permute.xlu0 %1537
  %v1540 = vmul.f32 %v1538, %v497
  %v1541 = vadd.f32 %v1535, %v1540
  %1542 = vset.pattern.permute.xlu0 2
  %1543 = vperm.xlu0 %1542, %v1529
  %v1544 = vpop.permute.xlu0 %1543
  %v1546 = vmul.f32 %v1544, %v507
  %v1547 = vadd.f32 %v1541, %v1546
  %1548 = vset.pattern.permute.xlu0 3
  %1549 = vperm.xlu0 %1548, %v1529
  %v1550 = vpop.permute.xlu0 %1549
  %v1552 = vmul.f32 %v1550, %v517
  %v1553 = vadd.f32 %v1547, %v1552
  %v1554 = vadd.f32 %v1528, %v1553
  %v1555 = vxor.u32 %v1554, 2147483648
  %v1556 = vmul.f32 %v1555, 1.442695
  %v1557 = vpow.pop %v1556
  %v1558 = vadd.f32 %v1557, 1.0
  %v1559 = vrcp.pop %v1558
  %v1560 = vmul.f32 1.0, %v1559
  %v1561 = vtanh.pop %v1554
  %v1562 = vld [vmem:[#allocation5] sm:$0x3]
  %1564 = vrot.lane.b32.xlu0 %v1562, 4
  %v1565 = vpop.permute.xlu0 %1564
  %v1567 = vmul.f32 %v1560, %v1565
  %1569 = vrot.lane.b32.xlu0 %v1561, 116
  %v1570 = vpop.permute.xlu0 %1569
  %v1572 = vmul.f32 %v1560, %v1570
  %1574 = vrot.lane.b32.xlu0 %v1572, 4
  %v1575 = vpop.permute.xlu0 %1574
  %v1577 = vadd.f32 %v1567, %v1575
  %v1578 = vtanh.pop %v1577
  %1580 = vrot.lane.b32.xlu0 %v1578, 4
  %v1581 = vpop.permute.xlu0 %1580
  %v1583 = vmul.f32 %v1560, %v1581
  %1585 = vrot.lane.b32.xlu0 %v1577, 124
  %v1586 = vpop.permute.xlu0 %1585
  %1588 = vst.msk [vmem:[#allocation5] sm:$0x3] %vm475, %v1586
  %1590 = vrot.lane.b32.xlu0 %v1583, 120
  %v1591 = vpop.permute.xlu0 %1590
  %1593 = vst.msk [vmem:[#allocation4] sm:$0x3] %vm475, %v1591
  %s1594 = scalar_lea.vmem [#allocation3], 30
  %1595 = vst.msk [vmem:[%s1594] sm:$0x3] %vm475, %v1591
  %v1596 = vld [vmem:[#allocation3] sm:$0x3]
  %v1597 = vld [vmem:[#allocation3 + $0x2] sm:$0x3]
  %v1598 = vld [vmem:[#allocation3 + $0x4] sm:$0x3]
  %v1599 = vld [vmem:[#allocation3 + $0x6] sm:$0x3]
  %v1600 = vld [vmem:[#allocation3 + $0x8] sm:$0x3]
  %v1601 = vld [vmem:[#allocation3 + $0xa] sm:$0x3]
  %v1602 = vld [vmem:[#allocation3 + $0xc] sm:$0x3]
  %v1603 = vld [vmem:[#allocation3 + $0xe] sm:$0x3]
  %v1604 = vld [vmem:[#allocation3 + $0x10] sm:$0x3]
  %v1605 = vld [vmem:[#allocation3 + $0x12] sm:$0x3]
  %v1606 = vld [vmem:[#allocation3 + $0x14] sm:$0x3]
  %v1607 = vld [vmem:[#allocation3 + $0x16] sm:$0x3]
  %v1608 = vld [vmem:[#allocation3 + $0x18] sm:$0x3]
  %v1609 = vld [vmem:[#allocation3 + $0x1a] sm:$0x3]
  %v1610 = vld [vmem:[#allocation3 + $0x1c] sm:$0x3]
  %v1611 = vld [vmem:[#allocation3 + $0x1e] sm:$0x3]
  %1612 = vst.msk [vmem:[%s4] sm:$0x3] %vm475, %v1596
  %1613 = vst.msk [vmem:[%s4 + $0x2] sm:$0x3] %vm475, %v1597
  %1614 = vst.msk [vmem:[%s4 + $0x4] sm:$0x3] %vm475, %v1598
  %1615 = vst.msk [vmem:[%s4 + $0x6] sm:$0x3] %vm475, %v1599
  %1616 = vst.msk [vmem:[%s4 + $0x8] sm:$0x3] %vm475, %v1600
  %1617 = vst.msk [vmem:[%s4 + $0xa] sm:$0x3] %vm475, %v1601
  %1618 = vst.msk [vmem:[%s4 + $0xc] sm:$0x3] %vm475, %v1602
  %1619 = vst.msk [vmem:[%s4 + $0xe] sm:$0x3] %vm475, %v1603
  %1620 = vst.msk [vmem:[%s4 + $0x10] sm:$0x3] %vm475, %v1604
  %1621 = vst.msk [vmem:[%s4 + $0x12] sm:$0x3] %vm475, %v1605
  %1622 = vst.msk [vmem:[%s4 + $0x14] sm:$0x3] %vm475, %v1606
  %1623 = vst.msk [vmem:[%s4 + $0x16] sm:$0x3] %vm475, %v1607
  %1624 = vst.msk [vmem:[%s4 + $0x18] sm:$0x3] %vm475, %v1608
  %1625 = vst.msk [vmem:[%s4 + $0x1a] sm:$0x3] %vm475, %v1609
  %1626 = vst.msk [vmem:[%s4 + $0x1c] sm:$0x3] %vm475, %v1610
  %1627 = vst.msk [vmem:[%s4 + $0x1e] sm:$0x3] %vm475, %v1611
  // Predicated region
  $region18: #{tpu_custom_call.1} parent=0 // pred_check
    _
  $region19: #{tpu_custom_call.1} parent=0 // pred_check_branch
    %1629 = sbr.rel (0) target = $region21
  $region20: #{tpu_custom_call.1} parent=0 // pred_region
    _
  $region21: #{tpu_custom_call.1} parent=0 // pred_fallthru
    _
  // Predicated region
  $region22: #{tpu_custom_call.1} parent=0 // pred_check
    _
  $region23: #{tpu_custom_call.1} parent=0 // pred_check_branch
    %1631 = sbr.rel (0) target = $region25
  $region24: #{tpu_custom_call.1} parent=0 // pred_region
    _
  $region25: #{tpu_custom_call.1} parent=0 // pred_fallthru
    _

</llo_original>
